<compile_context>
chip_gen: v6e
topology: v6e:2x2x1
jax: 0.10.0
libtpu: 0.0.40
codegen_flags: <defaults>
</compile_context>

<pallas_src>
import functools

import jax
import jax.numpy as jnp
from jax import lax
from jax.experimental import pallas as pl
from jax.experimental.pallas import tpu as pltpu

KSIZE = 5
PAD = 2


def luconv_kernel(w_ref, cols_ref, cb_ref, g_ref, b_ref, a_ref, o_ref,
                  *, relu, eps, m_total):
    """w_ref:    (C, Kp)  bf16 flattened conv weights (tap-major, cin-minor).
       cols_ref: (Kp, M)  bf16 im2col matrix, M = N*D*H*W on lanes.
       cb/g/b/a: (C, 1)   f32 conv bias / bn gamma / bn beta / prelu alpha.
       o_ref:    (C, M)   f32 output (channels on sublanes, spatial on lanes)."""
    # --- Conv3d as a single lane-dense MXU contraction (f32 accumulation) ---
    acc = jnp.dot(w_ref[...], cols_ref[...],
                  preferred_element_type=jnp.float32)          # (C, M) f32
    acc = acc + cb_ref[...]                                    # + bias

    # --- ContBatchNorm3d: batch stats, biased variance, one pass ------------
    inv_m = 1.0 / float(m_total)
    s = jnp.sum(acc, axis=1, keepdims=True)                    # (C, 1)
    ss = jnp.sum(acc * acc, axis=1, keepdims=True)             # (C, 1)
    mean = s * inv_m
    var = ss * inv_m - mean * mean
    scale = lax.rsqrt(var + eps) * g_ref[...]                  # (C, 1)
    shift = b_ref[...] - mean * scale                          # (C, 1)
    y = acc * scale + shift

    # --- activation ----------------------------------------------------------
    if relu:
        y = jnp.maximum(y, 0.0)
    else:  # PReLU with per-channel alpha
        y = jnp.where(y >= 0.0, y, a_ref[...] * y)

    o_ref[...] = y.astype(o_ref.dtype)


@functools.partial(jax.jit, static_argnames=("relu", "eps"))
def luconv_pallas(x_ncdhw, w_oidhw, conv_bias, bn_gamma, bn_beta, prelu_alpha,
                  *, relu=True, eps=1e-5):
    N, C, D, H, W = x_ncdhw.shape
    M = N * D * H * W
    K = KSIZE ** 3 * C
    Kp = ((K + 127) // 128) * 128          # pad contraction dim to lane tiles

    # NCDHW -> CNDHW, zero-pad the spatial dims (conv padding = 2).
    xc = jnp.transpose(x_ncdhw, (1, 0, 2, 3, 4)).astype(jnp.float32)
    xp = jnp.pad(xc, ((0, 0), (0, 0), (PAD, PAD), (PAD, PAD), (PAD, PAD)))

    # im2col: rows ordered (kd, kh, kw) tap-major, channel-minor -> (K, M).
    wins = [xp[:, :, kd:kd + D, kh:kh + H, kw:kw + W]
            for kd in range(KSIZE) for kh in range(KSIZE) for kw in range(KSIZE)]
    cols = jnp.stack(wins, axis=0).reshape(K, M)               # (125*C, M)
    cols = jnp.pad(cols, ((0, Kp - K), (0, 0))).astype(jnp.bfloat16)

    # Weights (O, I, kd, kh, kw) -> (O, kd, kh, kw, I) -> (C, K) -> pad -> bf16
    wmat = jnp.transpose(w_oidhw, (0, 2, 3, 4, 1)).reshape(C, K)
    wmat = jnp.pad(wmat.astype(jnp.float32), ((0, 0), (0, Kp - K)))
    wmat = wmat.astype(jnp.bfloat16)

    cb2 = conv_bias.reshape(C, 1).astype(jnp.float32)
    g2 = bn_gamma.reshape(C, 1).astype(jnp.float32)
    b2 = bn_beta.reshape(C, 1).astype(jnp.float32)
    a2 = prelu_alpha.reshape(C, 1).astype(jnp.float32)

    cost = pl.CostEstimate(
        flops=2 * C * Kp * M,
        transcendentals=C,
        bytes_accessed=cols.size * 2 + wmat.size * 2 + 4 * C * 4 + C * M * 4)

    out2d = pl.pallas_call(
        functools.partial(luconv_kernel, relu=relu, eps=float(eps), m_total=M),
        out_shape=jax.ShapeDtypeStruct((C, M), jnp.float32),
        in_specs=[pl.BlockSpec(memory_space=pltpu.MemorySpace.VMEM)] * 6,
        out_specs=pl.BlockSpec(memory_space=pltpu.MemorySpace.VMEM),
        cost_estimate=cost,
    )(wmat, cols, cb2, g2, b2, a2)

    # (C, M) -> (C, N, D, H, W) -> (N, C, D, H, W)
    return jnp.transpose(out2d.reshape(C, N, D, H, W), (1, 0, 2, 3, 4))


def luconv_reference(x, w, cb, gamma, beta, alpha, *, relu=True, eps=1e-5,
                     conv_dtype=jnp.float32):
    """Pure-JAX reference matching the PyTorch semantics (NCDHW).
       conv_dtype=bfloat16 reproduces the kernel's bf16 MXU operands exactly."""
    y = lax.conv_general_dilated(
        x.astype(conv_dtype), w.astype(conv_dtype),
        window_strides=(1, 1, 1), padding=((PAD, PAD),) * 3,
        dimension_numbers=("NCDHW", "OIDHW", "NCDHW"),
        preferred_element_type=jnp.float32)
    y = y + cb[None, :, None, None, None]
    mean = jnp.mean(y, axis=(0, 2, 3, 4), keepdims=True)
    var = jnp.mean(jnp.square(y - mean), axis=(0, 2, 3, 4), keepdims=True)
    y = (y - mean) * lax.rsqrt(var + eps)
    y = y * gamma[None, :, None, None, None] + beta[None, :, None, None, None]
    if relu:
        y = jnp.maximum(y, 0.0)
    else:
        y = jnp.where(y >= 0.0, y, alpha[None, :, None, None, None] * y)
    return y


if __name__ == "__main__":
    key = jax.random.PRNGKey(0)
    k_x, k_w, k_b, k_g, k_be = jax.random.split(key, 5)

    N, C, D, H, W = 2, 8, 8, 8, 8

    x = jax.random.normal(k_x, (N, C, D, H, W), jnp.float32)
    w = jax.random.normal(k_w, (C, C, KSIZE, KSIZE, KSIZE), jnp.float32) * 0.1
    conv_bias = jax.random.normal(k_b, (C,), jnp.float32) * 0.1
    bn_gamma = 1.0 + 0.1 * jax.random.normal(k_g, (C,), jnp.float32)
    bn_beta = 0.1 * jax.random.normal(k_be, (C,), jnp.float32)
    prelu_alpha = jnp.full((C,), 0.25, jnp.float32)  # PyTorch PReLU default

    for relu in (True, False):
        out = luconv_pallas(x, w, conv_bias, bn_gamma, bn_beta, prelu_alpha,
                            relu=relu)
        out = jax.block_until_ready(out)
        assert out.shape == (N, C, D, H, W)

        # Tight check vs a matched-precision (bf16 conv operands) reference.
        ref_m = luconv_reference(x, w, conv_bias, bn_gamma, bn_beta, prelu_alpha,
                                 relu=relu, conv_dtype=jnp.bfloat16)
        ref_m = jax.block_until_ready(ref_m)
        err_m = float(jnp.max(jnp.abs(out - ref_m)))
        assert err_m < 2e-3, f"relu={relu}: mismatch vs matched ref: {err_m}"

        # Loose sanity check vs the full-f32 PyTorch-semantics reference
        # (difference comes only from bf16 rounding of the MXU operands).
        ref_f = luconv_reference(x, w, conv_bias, bn_gamma, bn_beta, prelu_alpha,
                                 relu=relu, conv_dtype=jnp.float32)
        ref_f = jax.block_until_ready(ref_f)
        err_f = float(jnp.max(jnp.abs(out - ref_f)))
        assert err_f < 5e-2, f"relu={relu}: mismatch vs f32 ref: {err_f}"

    print("KERNEL_OK")
</pallas_src>

<mosaic_0001>
module attributes {stable_mosaic.version = 11 : i64} {
  func.func @luconv_kernel(%arg0: memref<8x1024xbf16, #tpu.memory_space<vmem>>, %arg1: memref<1024x1024xbf16, #tpu.memory_space<vmem>>, %arg2: memref<8x1xf32, #tpu.memory_space<vmem>>, %arg3: memref<8x1xf32, #tpu.memory_space<vmem>>, %arg4: memref<8x1xf32, #tpu.memory_space<vmem>>, %arg5: memref<8x1xf32, #tpu.memory_space<vmem>>, %arg6: memref<8x1024xf32, #tpu.memory_space<vmem>>) attributes {dimension_semantics = [], scalar_prefetch = 0 : i64, scratch_operands = 0 : i64, tpu.core_type = #tpu.core_type<tc>} {
    %c0 = arith.constant 0 : index
    %c0_0 = arith.constant 0 : index
    %0 = vector.load %arg0[%c0, %c0_0] : memref<8x1024xbf16, #tpu.memory_space<vmem>>, vector<8x1024xbf16>
    %c0_1 = arith.constant 0 : index
    %c0_2 = arith.constant 0 : index
    %1 = vector.load %arg1[%c0_1, %c0_2] : memref<1024x1024xbf16, #tpu.memory_space<vmem>>, vector<1024x1024xbf16>
    %cst = arith.constant dense<0.000000e+00> : vector<8x1024xf32>
    %2 = tpu.matmul %0, %1, %cst {dimension_numbers = #tpu.dot_dimension_numbers<[1], [0], [0], [1], [0, 0, 1, 1], [], []>} : vector<8x1024xbf16>, vector<1024x1024xbf16>, vector<8x1024xf32> -> vector<8x1024xf32>
    %c0_3 = arith.constant 0 : index
    %c0_4 = arith.constant 0 : index
    %3 = vector.load %arg2[%c0_3, %c0_4] : memref<8x1xf32, #tpu.memory_space<vmem>>, vector<8x1xf32>
    %4 = vector.broadcast %3 : vector<8x1xf32> to vector<8x1024xf32>
    %5 = arith.addf %2, %4 : vector<8x1024xf32>
    %cst_5 = arith.constant dense<0.000000e+00> : vector<8xf32>
    %6 = vector.multi_reduction <add>, %5, %cst_5 [1] : vector<8x1024xf32> to vector<8xf32>
    %7 = vector.shape_cast %6 : vector<8xf32> to vector<8x1xf32>
    %8 = arith.mulf %5, %5 : vector<8x1024xf32>
    %cst_6 = arith.constant dense<0.000000e+00> : vector<8xf32>
    %9 = vector.multi_reduction <add>, %8, %cst_6 [1] : vector<8x1024xf32> to vector<8xf32>
    %10 = vector.shape_cast %9 : vector<8xf32> to vector<8x1xf32>
    %cst_7 = arith.constant 9.765625E-4 : f32
    %11 = vector.broadcast %cst_7 : f32 to vector<8x1xf32>
    %12 = arith.mulf %7, %11 : vector<8x1xf32>
    %cst_8 = arith.constant 9.765625E-4 : f32
    %13 = vector.broadcast %cst_8 : f32 to vector<8x1xf32>
    %14 = arith.mulf %10, %13 : vector<8x1xf32>
    %15 = arith.mulf %12, %12 : vector<8x1xf32>
    %16 = arith.subf %14, %15 : vector<8x1xf32>
    %cst_9 = arith.constant 9.99999974E-6 : f32
    %17 = vector.broadcast %cst_9 : f32 to vector<8x1xf32>
    %18 = arith.addf %16, %17 : vector<8x1xf32>
    %19 = math.rsqrt %18 : vector<8x1xf32>
    %c0_10 = arith.constant 0 : index
    %c0_11 = arith.constant 0 : index
    %20 = vector.load %arg3[%c0_10, %c0_11] : memref<8x1xf32, #tpu.memory_space<vmem>>, vector<8x1xf32>
    %21 = arith.mulf %19, %20 : vector<8x1xf32>
    %c0_12 = arith.constant 0 : index
    %c0_13 = arith.constant 0 : index
    %22 = vector.load %arg4[%c0_12, %c0_13] : memref<8x1xf32, #tpu.memory_space<vmem>>, vector<8x1xf32>
    %23 = arith.mulf %12, %21 : vector<8x1xf32>
    %24 = arith.subf %22, %23 : vector<8x1xf32>
    %25 = vector.broadcast %21 : vector<8x1xf32> to vector<8x1024xf32>
    %26 = arith.mulf %5, %25 : vector<8x1024xf32>
    %27 = vector.broadcast %24 : vector<8x1xf32> to vector<8x1024xf32>
    %28 = arith.addf %26, %27 : vector<8x1024xf32>
    %cst_14 = arith.constant 0.000000e+00 : f32
    %29 = vector.broadcast %cst_14 : f32 to vector<8x1024xf32>
    %30 = arith.maximumf %28, %29 : vector<8x1024xf32>
    %c0_15 = arith.constant 0 : index
    %c0_16 = arith.constant 0 : index
    %31 = vector.load %arg6[%c0_15, %c0_16] : memref<8x1024xf32, #tpu.memory_space<vmem>>, vector<8x1024xf32>
    tpu.vector_store %arg6[%c0_15, %c0_16], %30 {strides = array<i32>} : memref<8x1024xf32, #tpu.memory_space<vmem>>, vector<8x1024xf32>,
    return
  }
}

</mosaic_0001>

<llo_original>
// kernel: luconv_pallas.1
$region0: #{luconv_pallas.1}
  #allocation0 [shape = 'u32[]', space=smem, size = 0x4, offset = 0x4, fixed_abs, tag = 'smem constant byte address 0x4 - core index']
  #allocation1 [shape = 'u32[144,128]{1,0:T(1,128)}', space=vmem, size = 0x12000, scoped, tag = 'internal scratch']
  %s0 = inlined_call_operand.vmem [shape: bf16[8,1024], index: 0, kind: input, shape index: {}]
  %s1 = inlined_call_operand.vmem [shape: bf16[1024,1024], index: 1, kind: input, shape index: {}]
  %s2 = inlined_call_operand.vmem [shape: f32[8,1], index: 2, kind: input, shape index: {}]
  %s3 = inlined_call_operand.vmem [shape: f32[8,1], index: 3, kind: input, shape index: {}]
  %s4 = inlined_call_operand.vmem [shape: f32[8,1], index: 4, kind: input, shape index: {}]
  %s5 = inlined_call_operand.vmem [shape: f32[8,1], index: 5, kind: input, shape index: {}]
  %s6 = inlined_call_operand.vmem [shape: f32[8,1024], index: 6, kind: output, shape index: {}]
  %s7 = sld [smem:[#allocation0]]
  $region34: #{luconv_pallas.1} parent=0
    _
  %s9 = ssub.s32 1, %s7
  %s10 = scalar_select 0, %s9, %s7
  // Predicated region
  $region2: #{luconv_pallas.1} parent=0 // pred_check
    _
  $region3: #{luconv_pallas.1} parent=0 // pred_check_branch
    %12 = sbr.rel (0) target = $region5
  $region4: #{luconv_pallas.1} parent=0 // pred_region
    _
  $region5: #{luconv_pallas.1} parent=0 // pred_fallthru
    _
  // Predicated region
  $region6: #{luconv_pallas.1} parent=0 // pred_check
    _
  $region7: #{luconv_pallas.1} parent=0 // pred_check_branch
    %14 = sbr.rel (0) target = $region9
  $region8: #{luconv_pallas.1} parent=0 // pred_region
    _
  $region9: #{luconv_pallas.1} parent=0 // pred_fallthru
    _
  // Predicated region
  $region10: #{luconv_pallas.1} parent=0 // pred_check
    _
  $region11: #{luconv_pallas.1} parent=0 // pred_check_branch
    %16 = sbr.rel (0) target = $region13
  $region12: #{luconv_pallas.1} parent=0 // pred_region
    _
  $region13: #{luconv_pallas.1} parent=0 // pred_fallthru
    _
  // Predicated region
  $region14: #{luconv_pallas.1} parent=0 // pred_check
    _
  $region15: #{luconv_pallas.1} parent=0 // pred_check_branch
    %18 = sbr.rel (0) target = $region17
  $region16: #{luconv_pallas.1} parent=0 // pred_region
    _
  $region17: #{luconv_pallas.1} parent=0 // pred_fallthru
    _
  // Predicated region
  $region18: #{luconv_pallas.1} parent=0 // pred_check
    _
  $region19: #{luconv_pallas.1} parent=0 // pred_check_branch
    %20 = sbr.rel (0) target = $region21
  $region20: #{luconv_pallas.1} parent=0 // pred_region
    _
  $region21: #{luconv_pallas.1} parent=0 // pred_fallthru
    _
  // Predicated region
  $region22: #{luconv_pallas.1} parent=0 // pred_check
    _
  $region23: #{luconv_pallas.1} parent=0 // pred_check_branch
    %22 = sbr.rel (0) target = $region25
  $region24: #{luconv_pallas.1} parent=0 // pred_region
    _
  $region25: #{luconv_pallas.1} parent=0 // pred_fallthru
    _
  %v23 = vld [vmem:[%s0] sm:$0xff]
  %v24 = vld [vmem:[%s0 + $0x8] sm:$0xff]
  %v25 = vld [vmem:[%s0 + $0x10] sm:$0xff]
  %v26 = vld [vmem:[%s0 + $0x18] sm:$0xff]
  %v27 = vld [vmem:[%s1] sm:$0xff]
  %v28 = vld [vmem:[%s1 + $0x8] sm:$0xff]
  %v29 = vld [vmem:[%s1 + $0x10] sm:$0xff]
  %v30 = vld [vmem:[%s1 + $0x18] sm:$0xff]
  %v31 = vld [vmem:[%s1 + $0x20] sm:$0xff]
  %v32 = vld [vmem:[%s1 + $0x28] sm:$0xff]
  %v33 = vld [vmem:[%s1 + $0x30] sm:$0xff]
  %v34 = vld [vmem:[%s1 + $0x38] sm:$0xff]
  %v35 = vld [vmem:[%s1 + $0x40] sm:$0xff]
  %v36 = vld [vmem:[%s1 + $0x48] sm:$0xff]
  %v37 = vld [vmem:[%s1 + $0x50] sm:$0xff]
  %v38 = vld [vmem:[%s1 + $0x58] sm:$0xff]
  %v39 = vld [vmem:[%s1 + $0x60] sm:$0xff]
  %v40 = vld [vmem:[%s1 + $0x68] sm:$0xff]
  %v41 = vld [vmem:[%s1 + $0x70] sm:$0xff]
  %v42 = vld [vmem:[%s1 + $0x78] sm:$0xff]
  %v43 = vld [vmem:[%s1 + $0x80] sm:$0xff]
  %v44 = vld [vmem:[%s1 + $0x88] sm:$0xff]
  %v45 = vld [vmem:[%s1 + $0x90] sm:$0xff]
  %v46 = vld [vmem:[%s1 + $0x98] sm:$0xff]
  %v47 = vld [vmem:[%s1 + $0xa0] sm:$0xff]
  %v48 = vld [vmem:[%s1 + $0xa8] sm:$0xff]
  %v49 = vld [vmem:[%s1 + $0xb0] sm:$0xff]
  %v50 = vld [vmem:[%s1 + $0xb8] sm:$0xff]
  %v51 = vld [vmem:[%s1 + $0xc0] sm:$0xff]
  %v52 = vld [vmem:[%s1 + $0xc8] sm:$0xff]
  %v53 = vld [vmem:[%s1 + $0xd0] sm:$0xff]
  %v54 = vld [vmem:[%s1 + $0xd8] sm:$0xff]
  %v55 = vld [vmem:[%s1 + $0xe0] sm:$0xff]
  %v56 = vld [vmem:[%s1 + $0xe8] sm:$0xff]
  %v57 = vld [vmem:[%s1 + $0xf0] sm:$0xff]
  %v58 = vld [vmem:[%s1 + $0xf8] sm:$0xff]
  %v59 = vld [vmem:[%s1 + $0x100] sm:$0xff]
  %v60 = vld [vmem:[%s1 + $0x108] sm:$0xff]
  %v61 = vld [vmem:[%s1 + $0x110] sm:$0xff]
  %v62 = vld [vmem:[%s1 + $0x118] sm:$0xff]
  %v63 = vld [vmem:[%s1 + $0x120] sm:$0xff]
  %v64 = vld [vmem:[%s1 + $0x128] sm:$0xff]
  %v65 = vld [vmem:[%s1 + $0x130] sm:$0xff]
  %v66 = vld [vmem:[%s1 + $0x138] sm:$0xff]
  %v67 = vld [vmem:[%s1 + $0x140] sm:$0xff]
  %v68 = vld [vmem:[%s1 + $0x148] sm:$0xff]
  %v69 = vld [vmem:[%s1 + $0x150] sm:$0xff]
  %v70 = vld [vmem:[%s1 + $0x158] sm:$0xff]
  %v71 = vld [vmem:[%s1 + $0x160] sm:$0xff]
  %v72 = vld [vmem:[%s1 + $0x168] sm:$0xff]
  %v73 = vld [vmem:[%s1 + $0x170] sm:$0xff]
  %v74 = vld [vmem:[%s1 + $0x178] sm:$0xff]
  %v75 = vld [vmem:[%s1 + $0x180] sm:$0xff]
  %v76 = vld [vmem:[%s1 + $0x188] sm:$0xff]
  %v77 = vld [vmem:[%s1 + $0x190] sm:$0xff]
  %v78 = vld [vmem:[%s1 + $0x198] sm:$0xff]
  %v79 = vld [vmem:[%s1 + $0x1a0] sm:$0xff]
  %v80 = vld [vmem:[%s1 + $0x1a8] sm:$0xff]
  %v81 = vld [vmem:[%s1 + $0x1b0] sm:$0xff]
  %v82 = vld [vmem:[%s1 + $0x1b8] sm:$0xff]
  %v83 = vld [vmem:[%s1 + $0x1c0] sm:$0xff]
  %v84 = vld [vmem:[%s1 + $0x1c8] sm:$0xff]
  %v85 = vld [vmem:[%s1 + $0x1d0] sm:$0xff]
  %v86 = vld [vmem:[%s1 + $0x1d8] sm:$0xff]
  %v87 = vld [vmem:[%s1 + $0x1e0] sm:$0xff]
  %v88 = vld [vmem:[%s1 + $0x1e8] sm:$0xff]
  %v89 = vld [vmem:[%s1 + $0x1f0] sm:$0xff]
  %v90 = vld [vmem:[%s1 + $0x1f8] sm:$0xff]
  %v91 = vld [vmem:[%s1 + $0x200] sm:$0xff]
  %v92 = vld [vmem:[%s1 + $0x208] sm:$0xff]
  %v93 = vld [vmem:[%s1 + $0x210] sm:$0xff]
  %v94 = vld [vmem:[%s1 + $0x218] sm:$0xff]
  %v95 = vld [vmem:[%s1 + $0x220] sm:$0xff]
  %v96 = vld [vmem:[%s1 + $0x228] sm:$0xff]
  %v97 = vld [vmem:[%s1 + $0x230] sm:$0xff]
  %v98 = vld [vmem:[%s1 + $0x238] sm:$0xff]
  %v99 = vld [vmem:[%s1 + $0x240] sm:$0xff]
  %v100 = vld [vmem:[%s1 + $0x248] sm:$0xff]
  %v101 = vld [vmem:[%s1 + $0x250] sm:$0xff]
  %v102 = vld [vmem:[%s1 + $0x258] sm:$0xff]
  %v103 = vld [vmem:[%s1 + $0x260] sm:$0xff]
  %v104 = vld [vmem:[%s1 + $0x268] sm:$0xff]
  %v105 = vld [vmem:[%s1 + $0x270] sm:$0xff]
  %v106 = vld [vmem:[%s1 + $0x278] sm:$0xff]
  %v107 = vld [vmem:[%s1 + $0x280] sm:$0xff]
  %v108 = vld [vmem:[%s1 + $0x288] sm:$0xff]
  %v109 = vld [vmem:[%s1 + $0x290] sm:$0xff]
  %v110 = vld [vmem:[%s1 + $0x298] sm:$0xff]
  %v111 = vld [vmem:[%s1 + $0x2a0] sm:$0xff]
  %v112 = vld [vmem:[%s1 + $0x2a8] sm:$0xff]
  %v113 = vld [vmem:[%s1 + $0x2b0] sm:$0xff]
  %v114 = vld [vmem:[%s1 + $0x2b8] sm:$0xff]
  %v115 = vld [vmem:[%s1 + $0x2c0] sm:$0xff]
  %v116 = vld [vmem:[%s1 + $0x2c8] sm:$0xff]
  %v117 = vld [vmem:[%s1 + $0x2d0] sm:$0xff]
  %v118 = vld [vmem:[%s1 + $0x2d8] sm:$0xff]
  %v119 = vld [vmem:[%s1 + $0x2e0] sm:$0xff]
  %v120 = vld [vmem:[%s1 + $0x2e8] sm:$0xff]
  %v121 = vld [vmem:[%s1 + $0x2f0] sm:$0xff]
  %v122 = vld [vmem:[%s1 + $0x2f8] sm:$0xff]
  %v123 = vld [vmem:[%s1 + $0x300] sm:$0xff]
  %v124 = vld [vmem:[%s1 + $0x308] sm:$0xff]
  %v125 = vld [vmem:[%s1 + $0x310] sm:$0xff]
  %v126 = vld [vmem:[%s1 + $0x318] sm:$0xff]
  %v127 = vld [vmem:[%s1 + $0x320] sm:$0xff]
  %v128 = vld [vmem:[%s1 + $0x328] sm:$0xff]
  %v129 = vld [vmem:[%s1 + $0x330] sm:$0xff]
  %v130 = vld [vmem:[%s1 + $0x338] sm:$0xff]
  %v131 = vld [vmem:[%s1 + $0x340] sm:$0xff]
  %v132 = vld [vmem:[%s1 + $0x348] sm:$0xff]
  %v133 = vld [vmem:[%s1 + $0x350] sm:$0xff]
  %v134 = vld [vmem:[%s1 + $0x358] sm:$0xff]
  %v135 = vld [vmem:[%s1 + $0x360] sm:$0xff]
  %v136 = vld [vmem:[%s1 + $0x368] sm:$0xff]
  %v137 = vld [vmem:[%s1 + $0x370] sm:$0xff]
  %v138 = vld [vmem:[%s1 + $0x378] sm:$0xff]
  %v139 = vld [vmem:[%s1 + $0x380] sm:$0xff]
  %v140 = vld [vmem:[%s1 + $0x388] sm:$0xff]
  %v141 = vld [vmem:[%s1 + $0x390] sm:$0xff]
  %v142 = vld [vmem:[%s1 + $0x398] sm:$0xff]
  %v143 = vld [vmem:[%s1 + $0x3a0] sm:$0xff]
  %v144 = vld [vmem:[%s1 + $0x3a8] sm:$0xff]
  %v145 = vld [vmem:[%s1 + $0x3b0] sm:$0xff]
  %v146 = vld [vmem:[%s1 + $0x3b8] sm:$0xff]
  %v147 = vld [vmem:[%s1 + $0x3c0] sm:$0xff]
  %v148 = vld [vmem:[%s1 + $0x3c8] sm:$0xff]
  %v149 = vld [vmem:[%s1 + $0x3d0] sm:$0xff]
  %v150 = vld [vmem:[%s1 + $0x3d8] sm:$0xff]
  %v151 = vld [vmem:[%s1 + $0x3e0] sm:$0xff]
  %v152 = vld [vmem:[%s1 + $0x3e8] sm:$0xff]
  %v153 = vld [vmem:[%s1 + $0x3f0] sm:$0xff]
  %v154 = vld [vmem:[%s1 + $0x3f8] sm:$0xff]
  %v155 = vld [vmem:[%s1 + $0x400] sm:$0xff]
  %v156 = vld [vmem:[%s1 + $0x408] sm:$0xff]
  %v157 = vld [vmem:[%s1 + $0x410] sm:$0xff]
  %v158 = vld [vmem:[%s1 + $0x418] sm:$0xff]
  %v159 = vld [vmem:[%s1 + $0x420] sm:$0xff]
  %v160 = vld [vmem:[%s1 + $0x428] sm:$0xff]
  %v161 = vld [vmem:[%s1 + $0x430] sm:$0xff]
  %v162 = vld [vmem:[%s1 + $0x438] sm:$0xff]
  %v163 = vld [vmem:[%s1 + $0x440] sm:$0xff]
  %v164 = vld [vmem:[%s1 + $0x448] sm:$0xff]
  %v165 = vld [vmem:[%s1 + $0x450] sm:$0xff]
  %v166 = vld [vmem:[%s1 + $0x458] sm:$0xff]
  %v167 = vld [vmem:[%s1 + $0x460] sm:$0xff]
  %v168 = vld [vmem:[%s1 + $0x468] sm:$0xff]
  %v169 = vld [vmem:[%s1 + $0x470] sm:$0xff]
  %v170 = vld [vmem:[%s1 + $0x478] sm:$0xff]
  %v171 = vld [vmem:[%s1 + $0x480] sm:$0xff]
  %v172 = vld [vmem:[%s1 + $0x488] sm:$0xff]
  %v173 = vld [vmem:[%s1 + $0x490] sm:$0xff]
  %v174 = vld [vmem:[%s1 + $0x498] sm:$0xff]
  %v175 = vld [vmem:[%s1 + $0x4a0] sm:$0xff]
  %v176 = vld [vmem:[%s1 + $0x4a8] sm:$0xff]
  %v177 = vld [vmem:[%s1 + $0x4b0] sm:$0xff]
  %v178 = vld [vmem:[%s1 + $0x4b8] sm:$0xff]
  %v179 = vld [vmem:[%s1 + $0x4c0] sm:$0xff]
  %v180 = vld [vmem:[%s1 + $0x4c8] sm:$0xff]
  %v181 = vld [vmem:[%s1 + $0x4d0] sm:$0xff]
  %v182 = vld [vmem:[%s1 + $0x4d8] sm:$0xff]
  %v183 = vld [vmem:[%s1 + $0x4e0] sm:$0xff]
  %v184 = vld [vmem:[%s1 + $0x4e8] sm:$0xff]
  %v185 = vld [vmem:[%s1 + $0x4f0] sm:$0xff]
  %v186 = vld [vmem:[%s1 + $0x4f8] sm:$0xff]
  %v187 = vld [vmem:[%s1 + $0x500] sm:$0xff]
  %v188 = vld [vmem:[%s1 + $0x508] sm:$0xff]
  %v189 = vld [vmem:[%s1 + $0x510] sm:$0xff]
  %v190 = vld [vmem:[%s1 + $0x518] sm:$0xff]
  %v191 = vld [vmem:[%s1 + $0x520] sm:$0xff]
  %v192 = vld [vmem:[%s1 + $0x528] sm:$0xff]
  %v193 = vld [vmem:[%s1 + $0x530] sm:$0xff]
  %v194 = vld [vmem:[%s1 + $0x538] sm:$0xff]
  %v195 = vld [vmem:[%s1 + $0x540] sm:$0xff]
  %v196 = vld [vmem:[%s1 + $0x548] sm:$0xff]
  %v197 = vld [vmem:[%s1 + $0x550] sm:$0xff]
  %v198 = vld [vmem:[%s1 + $0x558] sm:$0xff]
  %v199 = vld [vmem:[%s1 + $0x560] sm:$0xff]
  %v200 = vld [vmem:[%s1 + $0x568] sm:$0xff]
  %v201 = vld [vmem:[%s1 + $0x570] sm:$0xff]
  %v202 = vld [vmem:[%s1 + $0x578] sm:$0xff]
  %v203 = vld [vmem:[%s1 + $0x580] sm:$0xff]
  %v204 = vld [vmem:[%s1 + $0x588] sm:$0xff]
  %v205 = vld [vmem:[%s1 + $0x590] sm:$0xff]
  %v206 = vld [vmem:[%s1 + $0x598] sm:$0xff]
  %v207 = vld [vmem:[%s1 + $0x5a0] sm:$0xff]
  %v208 = vld [vmem:[%s1 + $0x5a8] sm:$0xff]
  %v209 = vld [vmem:[%s1 + $0x5b0] sm:$0xff]
  %v210 = vld [vmem:[%s1 + $0x5b8] sm:$0xff]
  %v211 = vld [vmem:[%s1 + $0x5c0] sm:$0xff]
  %v212 = vld [vmem:[%s1 + $0x5c8] sm:$0xff]
  %v213 = vld [vmem:[%s1 + $0x5d0] sm:$0xff]
  %v214 = vld [vmem:[%s1 + $0x5d8] sm:$0xff]
  %v215 = vld [vmem:[%s1 + $0x5e0] sm:$0xff]
  %v216 = vld [vmem:[%s1 + $0x5e8] sm:$0xff]
  %v217 = vld [vmem:[%s1 + $0x5f0] sm:$0xff]
  %v218 = vld [vmem:[%s1 + $0x5f8] sm:$0xff]
  %v219 = vld [vmem:[%s1 + $0x600] sm:$0xff]
  %v220 = vld [vmem:[%s1 + $0x608] sm:$0xff]
  %v221 = vld [vmem:[%s1 + $0x610] sm:$0xff]
  %v222 = vld [vmem:[%s1 + $0x618] sm:$0xff]
  %v223 = vld [vmem:[%s1 + $0x620] sm:$0xff]
  %v224 = vld [vmem:[%s1 + $0x628] sm:$0xff]
  %v225 = vld [vmem:[%s1 + $0x630] sm:$0xff]
  %v226 = vld [vmem:[%s1 + $0x638] sm:$0xff]
  %v227 = vld [vmem:[%s1 + $0x640] sm:$0xff]
  %v228 = vld [vmem:[%s1 + $0x648] sm:$0xff]
  %v229 = vld [vmem:[%s1 + $0x650] sm:$0xff]
  %v230 = vld [vmem:[%s1 + $0x658] sm:$0xff]
  %v231 = vld [vmem:[%s1 + $0x660] sm:$0xff]
  %v232 = vld [vmem:[%s1 + $0x668] sm:$0xff]
  %v233 = vld [vmem:[%s1 + $0x670] sm:$0xff]
  %v234 = vld [vmem:[%s1 + $0x678] sm:$0xff]
  %v235 = vld [vmem:[%s1 + $0x680] sm:$0xff]
  %v236 = vld [vmem:[%s1 + $0x688] sm:$0xff]
  %v237 = vld [vmem:[%s1 + $0x690] sm:$0xff]
  %v238 = vld [vmem:[%s1 + $0x698] sm:$0xff]
  %v239 = vld [vmem:[%s1 + $0x6a0] sm:$0xff]
  %v240 = vld [vmem:[%s1 + $0x6a8] sm:$0xff]
  %v241 = vld [vmem:[%s1 + $0x6b0] sm:$0xff]
  %v242 = vld [vmem:[%s1 + $0x6b8] sm:$0xff]
  %v243 = vld [vmem:[%s1 + $0x6c0] sm:$0xff]
  %v244 = vld [vmem:[%s1 + $0x6c8] sm:$0xff]
  %v245 = vld [vmem:[%s1 + $0x6d0] sm:$0xff]
  %v246 = vld [vmem:[%s1 + $0x6d8] sm:$0xff]
  %v247 = vld [vmem:[%s1 + $0x6e0] sm:$0xff]
  %v248 = vld [vmem:[%s1 + $0x6e8] sm:$0xff]
  %v249 = vld [vmem:[%s1 + $0x6f0] sm:$0xff]
  %v250 = vld [vmem:[%s1 + $0x6f8] sm:$0xff]
  %v251 = vld [vmem:[%s1 + $0x700] sm:$0xff]
  %v252 = vld [vmem:[%s1 + $0x708] sm:$0xff]
  %v253 = vld [vmem:[%s1 + $0x710] sm:$0xff]
  %v254 = vld [vmem:[%s1 + $0x718] sm:$0xff]
  %v255 = vld [vmem:[%s1 + $0x720] sm:$0xff]
  %v256 = vld [vmem:[%s1 + $0x728] sm:$0xff]
  %v257 = vld [vmem:[%s1 + $0x730] sm:$0xff]
  %v258 = vld [vmem:[%s1 + $0x738] sm:$0xff]
  %v259 = vld [vmem:[%s1 + $0x740] sm:$0xff]
  %v260 = vld [vmem:[%s1 + $0x748] sm:$0xff]
  %v261 = vld [vmem:[%s1 + $0x750] sm:$0xff]
  %v262 = vld [vmem:[%s1 + $0x758] sm:$0xff]
  %v263 = vld [vmem:[%s1 + $0x760] sm:$0xff]
  %v264 = vld [vmem:[%s1 + $0x768] sm:$0xff]
  %v265 = vld [vmem:[%s1 + $0x770] sm:$0xff]
  %v266 = vld [vmem:[%s1 + $0x778] sm:$0xff]
  %v267 = vld [vmem:[%s1 + $0x780] sm:$0xff]
  %v268 = vld [vmem:[%s1 + $0x788] sm:$0xff]
  %v269 = vld [vmem:[%s1 + $0x790] sm:$0xff]
  %v270 = vld [vmem:[%s1 + $0x798] sm:$0xff]
  %v271 = vld [vmem:[%s1 + $0x7a0] sm:$0xff]
  %v272 = vld [vmem:[%s1 + $0x7a8] sm:$0xff]
  %v273 = vld [vmem:[%s1 + $0x7b0] sm:$0xff]
  %v274 = vld [vmem:[%s1 + $0x7b8] sm:$0xff]
  %v275 = vld [vmem:[%s1 + $0x7c0] sm:$0xff]
  %v276 = vld [vmem:[%s1 + $0x7c8] sm:$0xff]
  %v277 = vld [vmem:[%s1 + $0x7d0] sm:$0xff]
  %v278 = vld [vmem:[%s1 + $0x7d8] sm:$0xff]
  %v279 = vld [vmem:[%s1 + $0x7e0] sm:$0xff]
  %v280 = vld [vmem:[%s1 + $0x7e8] sm:$0xff]
  %v281 = vld [vmem:[%s1 + $0x7f0] sm:$0xff]
  %v282 = vld [vmem:[%s1 + $0x7f8] sm:$0xff]
  %v283 = vld [vmem:[%s1 + $0x800] sm:$0xff]
  %v284 = vld [vmem:[%s1 + $0x808] sm:$0xff]
  %v285 = vld [vmem:[%s1 + $0x810] sm:$0xff]
  %v286 = vld [vmem:[%s1 + $0x818] sm:$0xff]
  %v287 = vld [vmem:[%s1 + $0x820] sm:$0xff]
  %v288 = vld [vmem:[%s1 + $0x828] sm:$0xff]
  %v289 = vld [vmem:[%s1 + $0x830] sm:$0xff]
  %v290 = vld [vmem:[%s1 + $0x838] sm:$0xff]
  %v291 = vld [vmem:[%s1 + $0x840] sm:$0xff]
  %v292 = vld [vmem:[%s1 + $0x848] sm:$0xff]
  %v293 = vld [vmem:[%s1 + $0x850] sm:$0xff]
  %v294 = vld [vmem:[%s1 + $0x858] sm:$0xff]
  %v295 = vld [vmem:[%s1 + $0x860] sm:$0xff]
  %v296 = vld [vmem:[%s1 + $0x868] sm:$0xff]
  %v297 = vld [vmem:[%s1 + $0x870] sm:$0xff]
  %v298 = vld [vmem:[%s1 + $0x878] sm:$0xff]
  %v299 = vld [vmem:[%s1 + $0x880] sm:$0xff]
  %v300 = vld [vmem:[%s1 + $0x888] sm:$0xff]
  %v301 = vld [vmem:[%s1 + $0x890] sm:$0xff]
  %v302 = vld [vmem:[%s1 + $0x898] sm:$0xff]
  %v303 = vld [vmem:[%s1 + $0x8a0] sm:$0xff]
  %v304 = vld [vmem:[%s1 + $0x8a8] sm:$0xff]
  %v305 = vld [vmem:[%s1 + $0x8b0] sm:$0xff]
  %v306 = vld [vmem:[%s1 + $0x8b8] sm:$0xff]
  %v307 = vld [vmem:[%s1 + $0x8c0] sm:$0xff]
  %v308 = vld [vmem:[%s1 + $0x8c8] sm:$0xff]
  %v309 = vld [vmem:[%s1 + $0x8d0] sm:$0xff]
  %v310 = vld [vmem:[%s1 + $0x8d8] sm:$0xff]
  %v311 = vld [vmem:[%s1 + $0x8e0] sm:$0xff]
  %v312 = vld [vmem:[%s1 + $0x8e8] sm:$0xff]
  %v313 = vld [vmem:[%s1 + $0x8f0] sm:$0xff]
  %v314 = vld [vmem:[%s1 + $0x8f8] sm:$0xff]
  %v315 = vld [vmem:[%s1 + $0x900] sm:$0xff]
  %v316 = vld [vmem:[%s1 + $0x908] sm:$0xff]
  %v317 = vld [vmem:[%s1 + $0x910] sm:$0xff]
  %v318 = vld [vmem:[%s1 + $0x918] sm:$0xff]
  %v319 = vld [vmem:[%s1 + $0x920] sm:$0xff]
  %v320 = vld [vmem:[%s1 + $0x928] sm:$0xff]
  %v321 = vld [vmem:[%s1 + $0x930] sm:$0xff]
  %v322 = vld [vmem:[%s1 + $0x938] sm:$0xff]
  %v323 = vld [vmem:[%s1 + $0x940] sm:$0xff]
  %v324 = vld [vmem:[%s1 + $0x948] sm:$0xff]
  %v325 = vld [vmem:[%s1 + $0x950] sm:$0xff]
  %v326 = vld [vmem:[%s1 + $0x958] sm:$0xff]
  %v327 = vld [vmem:[%s1 + $0x960] sm:$0xff]
  %v328 = vld [vmem:[%s1 + $0x968] sm:$0xff]
  %v329 = vld [vmem:[%s1 + $0x970] sm:$0xff]
  %v330 = vld [vmem:[%s1 + $0x978] sm:$0xff]
  %v331 = vld [vmem:[%s1 + $0x980] sm:$0xff]
  %v332 = vld [vmem:[%s1 + $0x988] sm:$0xff]
  %v333 = vld [vmem:[%s1 + $0x990] sm:$0xff]
  %v334 = vld [vmem:[%s1 + $0x998] sm:$0xff]
  %v335 = vld [vmem:[%s1 + $0x9a0] sm:$0xff]
  %v336 = vld [vmem:[%s1 + $0x9a8] sm:$0xff]
  %v337 = vld [vmem:[%s1 + $0x9b0] sm:$0xff]
  %v338 = vld [vmem:[%s1 + $0x9b8] sm:$0xff]
  %v339 = vld [vmem:[%s1 + $0x9c0] sm:$0xff]
  %v340 = vld [vmem:[%s1 + $0x9c8] sm:$0xff]
  %v341 = vld [vmem:[%s1 + $0x9d0] sm:$0xff]
  %v342 = vld [vmem:[%s1 + $0x9d8] sm:$0xff]
  %v343 = vld [vmem:[%s1 + $0x9e0] sm:$0xff]
  %v344 = vld [vmem:[%s1 + $0x9e8] sm:$0xff]
  %v345 = vld [vmem:[%s1 + $0x9f0] sm:$0xff]
  %v346 = vld [vmem:[%s1 + $0x9f8] sm:$0xff]
  %v347 = vld [vmem:[%s1 + $0xa00] sm:$0xff]
  %v348 = vld [vmem:[%s1 + $0xa08] sm:$0xff]
  %v349 = vld [vmem:[%s1 + $0xa10] sm:$0xff]
  %v350 = vld [vmem:[%s1 + $0xa18] sm:$0xff]
  %v351 = vld [vmem:[%s1 + $0xa20] sm:$0xff]
  %v352 = vld [vmem:[%s1 + $0xa28] sm:$0xff]
  %v353 = vld [vmem:[%s1 + $0xa30] sm:$0xff]
  %v354 = vld [vmem:[%s1 + $0xa38] sm:$0xff]
  %v355 = vld [vmem:[%s1 + $0xa40] sm:$0xff]
  %v356 = vld [vmem:[%s1 + $0xa48] sm:$0xff]
  %v357 = vld [vmem:[%s1 + $0xa50] sm:$0xff]
  %v358 = vld [vmem:[%s1 + $0xa58] sm:$0xff]
  %v359 = vld [vmem:[%s1 + $0xa60] sm:$0xff]
  %v360 = vld [vmem:[%s1 + $0xa68] sm:$0xff]
  %v361 = vld [vmem:[%s1 + $0xa70] sm:$0xff]
  %v362 = vld [vmem:[%s1 + $0xa78] sm:$0xff]
  %v363 = vld [vmem:[%s1 + $0xa80] sm:$0xff]
  %v364 = vld [vmem:[%s1 + $0xa88] sm:$0xff]
  %v365 = vld [vmem:[%s1 + $0xa90] sm:$0xff]
  %v366 = vld [vmem:[%s1 + $0xa98] sm:$0xff]
  %v367 = vld [vmem:[%s1 + $0xaa0] sm:$0xff]
  %v368 = vld [vmem:[%s1 + $0xaa8] sm:$0xff]
  %v369 = vld [vmem:[%s1 + $0xab0] sm:$0xff]
  %v370 = vld [vmem:[%s1 + $0xab8] sm:$0xff]
  %v371 = vld [vmem:[%s1 + $0xac0] sm:$0xff]
  %v372 = vld [vmem:[%s1 + $0xac8] sm:$0xff]
  %v373 = vld [vmem:[%s1 + $0xad0] sm:$0xff]
  %v374 = vld [vmem:[%s1 + $0xad8] sm:$0xff]
  %v375 = vld [vmem:[%s1 + $0xae0] sm:$0xff]
  %v376 = vld [vmem:[%s1 + $0xae8] sm:$0xff]
  %v377 = vld [vmem:[%s1 + $0xaf0] sm:$0xff]
  %v378 = vld [vmem:[%s1 + $0xaf8] sm:$0xff]
  %v379 = vld [vmem:[%s1 + $0xb00] sm:$0xff]
  %v380 = vld [vmem:[%s1 + $0xb08] sm:$0xff]
  %v381 = vld [vmem:[%s1 + $0xb10] sm:$0xff]
  %v382 = vld [vmem:[%s1 + $0xb18] sm:$0xff]
  %v383 = vld [vmem:[%s1 + $0xb20] sm:$0xff]
  %v384 = vld [vmem:[%s1 + $0xb28] sm:$0xff]
  %v385 = vld [vmem:[%s1 + $0xb30] sm:$0xff]
  %v386 = vld [vmem:[%s1 + $0xb38] sm:$0xff]
  %v387 = vld [vmem:[%s1 + $0xb40] sm:$0xff]
  %v388 = vld [vmem:[%s1 + $0xb48] sm:$0xff]
  %v389 = vld [vmem:[%s1 + $0xb50] sm:$0xff]
  %v390 = vld [vmem:[%s1 + $0xb58] sm:$0xff]
  %v391 = vld [vmem:[%s1 + $0xb60] sm:$0xff]
  %v392 = vld [vmem:[%s1 + $0xb68] sm:$0xff]
  %v393 = vld [vmem:[%s1 + $0xb70] sm:$0xff]
  %v394 = vld [vmem:[%s1 + $0xb78] sm:$0xff]
  %v395 = vld [vmem:[%s1 + $0xb80] sm:$0xff]
  %v396 = vld [vmem:[%s1 + $0xb88] sm:$0xff]
  %v397 = vld [vmem:[%s1 + $0xb90] sm:$0xff]
  %v398 = vld [vmem:[%s1 + $0xb98] sm:$0xff]
  %v399 = vld [vmem:[%s1 + $0xba0] sm:$0xff]
  %v400 = vld [vmem:[%s1 + $0xba8] sm:$0xff]
  %v401 = vld [vmem:[%s1 + $0xbb0] sm:$0xff]
  %v402 = vld [vmem:[%s1 + $0xbb8] sm:$0xff]
  %v403 = vld [vmem:[%s1 + $0xbc0] sm:$0xff]
  %v404 = vld [vmem:[%s1 + $0xbc8] sm:$0xff]
  %v405 = vld [vmem:[%s1 + $0xbd0] sm:$0xff]
  %v406 = vld [vmem:[%s1 + $0xbd8] sm:$0xff]
  %v407 = vld [vmem:[%s1 + $0xbe0] sm:$0xff]
  %v408 = vld [vmem:[%s1 + $0xbe8] sm:$0xff]
  %v409 = vld [vmem:[%s1 + $0xbf0] sm:$0xff]
  %v410 = vld [vmem:[%s1 + $0xbf8] sm:$0xff]
  %v411 = vld [vmem:[%s1 + $0xc00] sm:$0xff]
  %v412 = vld [vmem:[%s1 + $0xc08] sm:$0xff]
  %v413 = vld [vmem:[%s1 + $0xc10] sm:$0xff]
  %v414 = vld [vmem:[%s1 + $0xc18] sm:$0xff]
  %v415 = vld [vmem:[%s1 + $0xc20] sm:$0xff]
  %v416 = vld [vmem:[%s1 + $0xc28] sm:$0xff]
  %v417 = vld [vmem:[%s1 + $0xc30] sm:$0xff]
  %v418 = vld [vmem:[%s1 + $0xc38] sm:$0xff]
  %v419 = vld [vmem:[%s1 + $0xc40] sm:$0xff]
  %v420 = vld [vmem:[%s1 + $0xc48] sm:$0xff]
  %v421 = vld [vmem:[%s1 + $0xc50] sm:$0xff]
  %v422 = vld [vmem:[%s1 + $0xc58] sm:$0xff]
  %v423 = vld [vmem:[%s1 + $0xc60] sm:$0xff]
  %v424 = vld [vmem:[%s1 + $0xc68] sm:$0xff]
  %v425 = vld [vmem:[%s1 + $0xc70] sm:$0xff]
  %v426 = vld [vmem:[%s1 + $0xc78] sm:$0xff]
  %v427 = vld [vmem:[%s1 + $0xc80] sm:$0xff]
  %v428 = vld [vmem:[%s1 + $0xc88] sm:$0xff]
  %v429 = vld [vmem:[%s1 + $0xc90] sm:$0xff]
  %v430 = vld [vmem:[%s1 + $0xc98] sm:$0xff]
  %v431 = vld [vmem:[%s1 + $0xca0] sm:$0xff]
  %v432 = vld [vmem:[%s1 + $0xca8] sm:$0xff]
  %v433 = vld [vmem:[%s1 + $0xcb0] sm:$0xff]
  %v434 = vld [vmem:[%s1 + $0xcb8] sm:$0xff]
  %v435 = vld [vmem:[%s1 + $0xcc0] sm:$0xff]
  %v436 = vld [vmem:[%s1 + $0xcc8] sm:$0xff]
  %v437 = vld [vmem:[%s1 + $0xcd0] sm:$0xff]
  %v438 = vld [vmem:[%s1 + $0xcd8] sm:$0xff]
  %v439 = vld [vmem:[%s1 + $0xce0] sm:$0xff]
  %v440 = vld [vmem:[%s1 + $0xce8] sm:$0xff]
  %v441 = vld [vmem:[%s1 + $0xcf0] sm:$0xff]
  %v442 = vld [vmem:[%s1 + $0xcf8] sm:$0xff]
  %v443 = vld [vmem:[%s1 + $0xd00] sm:$0xff]
  %v444 = vld [vmem:[%s1 + $0xd08] sm:$0xff]
  %v445 = vld [vmem:[%s1 + $0xd10] sm:$0xff]
  %v446 = vld [vmem:[%s1 + $0xd18] sm:$0xff]
  %v447 = vld [vmem:[%s1 + $0xd20] sm:$0xff]
  %v448 = vld [vmem:[%s1 + $0xd28] sm:$0xff]
  %v449 = vld [vmem:[%s1 + $0xd30] sm:$0xff]
  %v450 = vld [vmem:[%s1 + $0xd38] sm:$0xff]
  %v451 = vld [vmem:[%s1 + $0xd40] sm:$0xff]
  %v452 = vld [vmem:[%s1 + $0xd48] sm:$0xff]
  %v453 = vld [vmem:[%s1 + $0xd50] sm:$0xff]
  %v454 = vld [vmem:[%s1 + $0xd58] sm:$0xff]
  %v455 = vld [vmem:[%s1 + $0xd60] sm:$0xff]
  %v456 = vld [vmem:[%s1 + $0xd68] sm:$0xff]
  %v457 = vld [vmem:[%s1 + $0xd70] sm:$0xff]
  %v458 = vld [vmem:[%s1 + $0xd78] sm:$0xff]
  %v459 = vld [vmem:[%s1 + $0xd80] sm:$0xff]
  %v460 = vld [vmem:[%s1 + $0xd88] sm:$0xff]
  %v461 = vld [vmem:[%s1 + $0xd90] sm:$0xff]
  %v462 = vld [vmem:[%s1 + $0xd98] sm:$0xff]
  %v463 = vld [vmem:[%s1 + $0xda0] sm:$0xff]
  %v464 = vld [vmem:[%s1 + $0xda8] sm:$0xff]
  %v465 = vld [vmem:[%s1 + $0xdb0] sm:$0xff]
  %v466 = vld [vmem:[%s1 + $0xdb8] sm:$0xff]
  %v467 = vld [vmem:[%s1 + $0xdc0] sm:$0xff]
  %v468 = vld [vmem:[%s1 + $0xdc8] sm:$0xff]
  %v469 = vld [vmem:[%s1 + $0xdd0] sm:$0xff]
  %v470 = vld [vmem:[%s1 + $0xdd8] sm:$0xff]
  %v471 = vld [vmem:[%s1 + $0xde0] sm:$0xff]
  %v472 = vld [vmem:[%s1 + $0xde8] sm:$0xff]
  %v473 = vld [vmem:[%s1 + $0xdf0] sm:$0xff]
  %v474 = vld [vmem:[%s1 + $0xdf8] sm:$0xff]
  %v475 = vld [vmem:[%s1 + $0xe00] sm:$0xff]
  %v476 = vld [vmem:[%s1 + $0xe08] sm:$0xff]
  %v477 = vld [vmem:[%s1 + $0xe10] sm:$0xff]
  %v478 = vld [vmem:[%s1 + $0xe18] sm:$0xff]
  %v479 = vld [vmem:[%s1 + $0xe20] sm:$0xff]
  %v480 = vld [vmem:[%s1 + $0xe28] sm:$0xff]
  %v481 = vld [vmem:[%s1 + $0xe30] sm:$0xff]
  %v482 = vld [vmem:[%s1 + $0xe38] sm:$0xff]
  %v483 = vld [vmem:[%s1 + $0xe40] sm:$0xff]
  %v484 = vld [vmem:[%s1 + $0xe48] sm:$0xff]
  %v485 = vld [vmem:[%s1 + $0xe50] sm:$0xff]
  %v486 = vld [vmem:[%s1 + $0xe58] sm:$0xff]
  %v487 = vld [vmem:[%s1 + $0xe60] sm:$0xff]
  %v488 = vld [vmem:[%s1 + $0xe68] sm:$0xff]
  %v489 = vld [vmem:[%s1 + $0xe70] sm:$0xff]
  %v490 = vld [vmem:[%s1 + $0xe78] sm:$0xff]
  %v491 = vld [vmem:[%s1 + $0xe80] sm:$0xff]
  %v492 = vld [vmem:[%s1 + $0xe88] sm:$0xff]
  %v493 = vld [vmem:[%s1 + $0xe90] sm:$0xff]
  %v494 = vld [vmem:[%s1 + $0xe98] sm:$0xff]
  %v495 = vld [vmem:[%s1 + $0xea0] sm:$0xff]
  %v496 = vld [vmem:[%s1 + $0xea8] sm:$0xff]
  %v497 = vld [vmem:[%s1 + $0xeb0] sm:$0xff]
  %v498 = vld [vmem:[%s1 + $0xeb8] sm:$0xff]
  %v499 = vld [vmem:[%s1 + $0xec0] sm:$0xff]
  %v500 = vld [vmem:[%s1 + $0xec8] sm:$0xff]
  %v501 = vld [vmem:[%s1 + $0xed0] sm:$0xff]
  %v502 = vld [vmem:[%s1 + $0xed8] sm:$0xff]
  %v503 = vld [vmem:[%s1 + $0xee0] sm:$0xff]
  %v504 = vld [vmem:[%s1 + $0xee8] sm:$0xff]
  %v505 = vld [vmem:[%s1 + $0xef0] sm:$0xff]
  %v506 = vld [vmem:[%s1 + $0xef8] sm:$0xff]
  %v507 = vld [vmem:[%s1 + $0xf00] sm:$0xff]
  %v508 = vld [vmem:[%s1 + $0xf08] sm:$0xff]
  %v509 = vld [vmem:[%s1 + $0xf10] sm:$0xff]
  %v510 = vld [vmem:[%s1 + $0xf18] sm:$0xff]
  %v511 = vld [vmem:[%s1 + $0xf20] sm:$0xff]
  %v512 = vld [vmem:[%s1 + $0xf28] sm:$0xff]
  %v513 = vld [vmem:[%s1 + $0xf30] sm:$0xff]
  %v514 = vld [vmem:[%s1 + $0xf38] sm:$0xff]
  %v515 = vld [vmem:[%s1 + $0xf40] sm:$0xff]
  %v516 = vld [vmem:[%s1 + $0xf48] sm:$0xff]
  %v517 = vld [vmem:[%s1 + $0xf50] sm:$0xff]
  %v518 = vld [vmem:[%s1 + $0xf58] sm:$0xff]
  %v519 = vld [vmem:[%s1 + $0xf60] sm:$0xff]
  %v520 = vld [vmem:[%s1 + $0xf68] sm:$0xff]
  %v521 = vld [vmem:[%s1 + $0xf70] sm:$0xff]
  %v522 = vld [vmem:[%s1 + $0xf78] sm:$0xff]
  %v523 = vld [vmem:[%s1 + $0xf80] sm:$0xff]
  %v524 = vld [vmem:[%s1 + $0xf88] sm:$0xff]
  %v525 = vld [vmem:[%s1 + $0xf90] sm:$0xff]
  %v526 = vld [vmem:[%s1 + $0xf98] sm:$0xff]
  %v527 = vld [vmem:[%s1 + $0xfa0] sm:$0xff]
  %v528 = vld [vmem:[%s1 + $0xfa8] sm:$0xff]
  %v529 = vld [vmem:[%s1 + $0xfb0] sm:$0xff]
  %v530 = vld [vmem:[%s1 + $0xfb8] sm:$0xff]
  %v531 = vld [vmem:[%s1 + $0xfc0] sm:$0xff]
  %v532 = vld [vmem:[%s1 + $0xfc8] sm:$0xff]
  %v533 = vld [vmem:[%s1 + $0xfd0] sm:$0xff]
  %v534 = vld [vmem:[%s1 + $0xfd8] sm:$0xff]
  %v535 = vld [vmem:[%s1 + $0xfe0] sm:$0xff]
  %v536 = vld [vmem:[%s1 + $0xfe8] sm:$0xff]
  %v537 = vld [vmem:[%s1 + $0xff0] sm:$0xff]
  %v538 = vld [vmem:[%s1 + $0xff8] sm:$0xff]
  %v539 = vld [vmem:[%s2] sm:$0xff]
  %541 = vset.pattern.permute.xlu0 0
  %542 = vperm.xlu0 %541, %v539
  %v543 = vpop.permute.xlu0 %542
  %v549 = vunpack.c.l.b16 %v23
  %v550 = vunpack.c.h.b16 %v23
  %v551 = vunpack.c.l.b16 %v24
  %v552 = vunpack.c.h.b16 %v24
  %v553 = vunpack.c.l.b16 %v25
  %v554 = vunpack.c.h.b16 %v25
  %v555 = vunpack.c.l.b16 %v26
  %v556 = vunpack.c.h.b16 %v26
  %v557 = vpack.c.b16 %v549, %v549
  %v558 = vpack.c.b16 %v550, %v550
  %v559 = vpack.c.b16 %v551, %v551
  %v560 = vpack.c.b16 %v552, %v552
  %v561 = vpack.c.b16 %v553, %v553
  %v562 = vpack.c.b16 %v554, %v554
  %v563 = vpack.c.b16 %v555, %v555
  %v564 = vpack.c.b16 %v556, %v556
  %v1085 = vunpack.c.l.b16 %v27
  %v1086 = vunpack.c.h.b16 %v27
  %v1087 = vunpack.c.l.b16 %v28
  %v1088 = vunpack.c.h.b16 %v28
  %v1089 = vunpack.c.l.b16 %v29
  %v1090 = vunpack.c.h.b16 %v29
  %v1091 = vunpack.c.l.b16 %v30
  %v1092 = vunpack.c.h.b16 %v30
  %v1093 = vunpack.c.l.b16 %v31
  %v1094 = vunpack.c.h.b16 %v31
  %v1095 = vunpack.c.l.b16 %v32
  %v1096 = vunpack.c.h.b16 %v32
  %v1097 = vunpack.c.l.b16 %v33
  %v1098 = vunpack.c.h.b16 %v33
  %v1099 = vunpack.c.l.b16 %v34
  %v1100 = vunpack.c.h.b16 %v34
  %v1101 = vunpack.c.l.b16 %v35
  %v1102 = vunpack.c.h.b16 %v35
  %v1103 = vunpack.c.l.b16 %v36
  %v1104 = vunpack.c.h.b16 %v36
  %v1105 = vunpack.c.l.b16 %v37
  %v1106 = vunpack.c.h.b16 %v37
  %v1107 = vunpack.c.l.b16 %v38
  %v1108 = vunpack.c.h.b16 %v38
  %v1109 = vunpack.c.l.b16 %v39
  %v1110 = vunpack.c.h.b16 %v39
  %v1111 = vunpack.c.l.b16 %v40
  %v1112 = vunpack.c.h.b16 %v40
  %v1113 = vunpack.c.l.b16 %v41
  %v1114 = vunpack.c.h.b16 %v41
  %v1115 = vunpack.c.l.b16 %v42
  %v1116 = vunpack.c.h.b16 %v42
  %v1117 = vunpack.c.l.b16 %v43
  %v1118 = vunpack.c.h.b16 %v43
  %v1119 = vunpack.c.l.b16 %v44
  %v1120 = vunpack.c.h.b16 %v44
  %v1121 = vunpack.c.l.b16 %v45
  %v1122 = vunpack.c.h.b16 %v45
  %v1123 = vunpack.c.l.b16 %v46
  %v1124 = vunpack.c.h.b16 %v46
  %v1125 = vunpack.c.l.b16 %v47
  %v1126 = vunpack.c.h.b16 %v47
  %v1127 = vunpack.c.l.b16 %v48
  %v1128 = vunpack.c.h.b16 %v48
  %v1129 = vunpack.c.l.b16 %v49
  %v1130 = vunpack.c.h.b16 %v49
  %v1131 = vunpack.c.l.b16 %v50
  %v1132 = vunpack.c.h.b16 %v50
  %v1133 = vunpack.c.l.b16 %v51
  %v1134 = vunpack.c.h.b16 %v51
  %v1135 = vunpack.c.l.b16 %v52
  %v1136 = vunpack.c.h.b16 %v52
  %v1137 = vunpack.c.l.b16 %v53
  %v1138 = vunpack.c.h.b16 %v53
  %v1139 = vunpack.c.l.b16 %v54
  %v1140 = vunpack.c.h.b16 %v54
  %v1141 = vunpack.c.l.b16 %v55
  %v1142 = vunpack.c.h.b16 %v55
  %v1143 = vunpack.c.l.b16 %v56
  %v1144 = vunpack.c.h.b16 %v56
  %v1145 = vunpack.c.l.b16 %v57
  %v1146 = vunpack.c.h.b16 %v57
  %v1147 = vunpack.c.l.b16 %v58
  %v1148 = vunpack.c.h.b16 %v58
  %v1149 = vunpack.c.l.b16 %v59
  %v1150 = vunpack.c.h.b16 %v59
  %v1151 = vunpack.c.l.b16 %v60
  %v1152 = vunpack.c.h.b16 %v60
  %v1153 = vunpack.c.l.b16 %v61
  %v1154 = vunpack.c.h.b16 %v61
  %v1155 = vunpack.c.l.b16 %v62
  %v1156 = vunpack.c.h.b16 %v62
  %v1157 = vunpack.c.l.b16 %v63
  %v1158 = vunpack.c.h.b16 %v63
  %v1159 = vunpack.c.l.b16 %v64
  %v1160 = vunpack.c.h.b16 %v64
  %v1161 = vunpack.c.l.b16 %v65
  %v1162 = vunpack.c.h.b16 %v65
  %v1163 = vunpack.c.l.b16 %v66
  %v1164 = vunpack.c.h.b16 %v66
  %v1165 = vunpack.c.l.b16 %v67
  %v1166 = vunpack.c.h.b16 %v67
  %v1167 = vunpack.c.l.b16 %v68
  %v1168 = vunpack.c.h.b16 %v68
  %v1169 = vunpack.c.l.b16 %v69
  %v1170 = vunpack.c.h.b16 %v69
  %v1171 = vunpack.c.l.b16 %v70
  %v1172 = vunpack.c.h.b16 %v70
  %v1173 = vunpack.c.l.b16 %v71
  %v1174 = vunpack.c.h.b16 %v71
  %v1175 = vunpack.c.l.b16 %v72
  %v1176 = vunpack.c.h.b16 %v72
  %v1177 = vunpack.c.l.b16 %v73
  %v1178 = vunpack.c.h.b16 %v73
  %v1179 = vunpack.c.l.b16 %v74
  %v1180 = vunpack.c.h.b16 %v74
  %v1181 = vunpack.c.l.b16 %v75
  %v1182 = vunpack.c.h.b16 %v75
  %v1183 = vunpack.c.l.b16 %v76
  %v1184 = vunpack.c.h.b16 %v76
  %v1185 = vunpack.c.l.b16 %v77
  %v1186 = vunpack.c.h.b16 %v77
  %v1187 = vunpack.c.l.b16 %v78
  %v1188 = vunpack.c.h.b16 %v78
  %v1189 = vunpack.c.l.b16 %v79
  %v1190 = vunpack.c.h.b16 %v79
  %v1191 = vunpack.c.l.b16 %v80
  %v1192 = vunpack.c.h.b16 %v80
  %v1193 = vunpack.c.l.b16 %v81
  %v1194 = vunpack.c.h.b16 %v81
  %v1195 = vunpack.c.l.b16 %v82
  %v1196 = vunpack.c.h.b16 %v82
  %v1197 = vunpack.c.l.b16 %v83
  %v1198 = vunpack.c.h.b16 %v83
  %v1199 = vunpack.c.l.b16 %v84
  %v1200 = vunpack.c.h.b16 %v84
  %v1201 = vunpack.c.l.b16 %v85
  %v1202 = vunpack.c.h.b16 %v85
  %v1203 = vunpack.c.l.b16 %v86
  %v1204 = vunpack.c.h.b16 %v86
  %v1205 = vunpack.c.l.b16 %v87
  %v1206 = vunpack.c.h.b16 %v87
  %v1207 = vunpack.c.l.b16 %v88
  %v1208 = vunpack.c.h.b16 %v88
  %v1209 = vunpack.c.l.b16 %v89
  %v1210 = vunpack.c.h.b16 %v89
  %v1211 = vunpack.c.l.b16 %v90
  %v1212 = vunpack.c.h.b16 %v90
  %v1213 = vunpack.c.l.b16 %v91
  %v1214 = vunpack.c.h.b16 %v91
  %v1215 = vunpack.c.l.b16 %v92
  %v1216 = vunpack.c.h.b16 %v92
  %v1217 = vunpack.c.l.b16 %v93
  %v1218 = vunpack.c.h.b16 %v93
  %v1219 = vunpack.c.l.b16 %v94
  %v1220 = vunpack.c.h.b16 %v94
  %v1221 = vunpack.c.l.b16 %v95
  %v1222 = vunpack.c.h.b16 %v95
  %v1223 = vunpack.c.l.b16 %v96
  %v1224 = vunpack.c.h.b16 %v96
  %v1225 = vunpack.c.l.b16 %v97
  %v1226 = vunpack.c.h.b16 %v97
  %v1227 = vunpack.c.l.b16 %v98
  %v1228 = vunpack.c.h.b16 %v98
  %v1229 = vunpack.c.l.b16 %v99
  %v1230 = vunpack.c.h.b16 %v99
  %v1231 = vunpack.c.l.b16 %v100
  %v1232 = vunpack.c.h.b16 %v100
  %v1233 = vunpack.c.l.b16 %v101
  %v1234 = vunpack.c.h.b16 %v101
  %v1235 = vunpack.c.l.b16 %v102
  %v1236 = vunpack.c.h.b16 %v102
  %v1237 = vunpack.c.l.b16 %v103
  %v1238 = vunpack.c.h.b16 %v103
  %v1239 = vunpack.c.l.b16 %v104
  %v1240 = vunpack.c.h.b16 %v104
  %v1241 = vunpack.c.l.b16 %v105
  %v1242 = vunpack.c.h.b16 %v105
  %v1243 = vunpack.c.l.b16 %v106
  %v1244 = vunpack.c.h.b16 %v106
  %v1245 = vunpack.c.l.b16 %v107
  %v1246 = vunpack.c.h.b16 %v107
  %v1247 = vunpack.c.l.b16 %v108
  %v1248 = vunpack.c.h.b16 %v108
  %v1249 = vunpack.c.l.b16 %v109
  %v1250 = vunpack.c.h.b16 %v109
  %v1251 = vunpack.c.l.b16 %v110
  %v1252 = vunpack.c.h.b16 %v110
  %v1253 = vunpack.c.l.b16 %v111
  %v1254 = vunpack.c.h.b16 %v111
  %v1255 = vunpack.c.l.b16 %v112
  %v1256 = vunpack.c.h.b16 %v112
  %v1257 = vunpack.c.l.b16 %v113
  %v1258 = vunpack.c.h.b16 %v113
  %v1259 = vunpack.c.l.b16 %v114
  %v1260 = vunpack.c.h.b16 %v114
  %v1261 = vunpack.c.l.b16 %v115
  %v1262 = vunpack.c.h.b16 %v115
  %v1263 = vunpack.c.l.b16 %v116
  %v1264 = vunpack.c.h.b16 %v116
  %v1265 = vunpack.c.l.b16 %v117
  %v1266 = vunpack.c.h.b16 %v117
  %v1267 = vunpack.c.l.b16 %v118
  %v1268 = vunpack.c.h.b16 %v118
  %v1269 = vunpack.c.l.b16 %v119
  %v1270 = vunpack.c.h.b16 %v119
  %v1271 = vunpack.c.l.b16 %v120
  %v1272 = vunpack.c.h.b16 %v120
  %v1273 = vunpack.c.l.b16 %v121
  %v1274 = vunpack.c.h.b16 %v121
  %v1275 = vunpack.c.l.b16 %v122
  %v1276 = vunpack.c.h.b16 %v122
  %v1277 = vunpack.c.l.b16 %v123
  %v1278 = vunpack.c.h.b16 %v123
  %v1279 = vunpack.c.l.b16 %v124
  %v1280 = vunpack.c.h.b16 %v124
  %v1281 = vunpack.c.l.b16 %v125
  %v1282 = vunpack.c.h.b16 %v125
  %v1283 = vunpack.c.l.b16 %v126
  %v1284 = vunpack.c.h.b16 %v126
  %v1285 = vunpack.c.l.b16 %v127
  %v1286 = vunpack.c.h.b16 %v127
  %v1287 = vunpack.c.l.b16 %v128
  %v1288 = vunpack.c.h.b16 %v128
  %v1289 = vunpack.c.l.b16 %v129
  %v1290 = vunpack.c.h.b16 %v129
  %v1291 = vunpack.c.l.b16 %v130
  %v1292 = vunpack.c.h.b16 %v130
  %v1293 = vunpack.c.l.b16 %v131
  %v1294 = vunpack.c.h.b16 %v131
  %v1295 = vunpack.c.l.b16 %v132
  %v1296 = vunpack.c.h.b16 %v132
  %v1297 = vunpack.c.l.b16 %v133
  %v1298 = vunpack.c.h.b16 %v133
  %v1299 = vunpack.c.l.b16 %v134
  %v1300 = vunpack.c.h.b16 %v134
  %v1301 = vunpack.c.l.b16 %v135
  %v1302 = vunpack.c.h.b16 %v135
  %v1303 = vunpack.c.l.b16 %v136
  %v1304 = vunpack.c.h.b16 %v136
  %v1305 = vunpack.c.l.b16 %v137
  %v1306 = vunpack.c.h.b16 %v137
  %v1307 = vunpack.c.l.b16 %v138
  %v1308 = vunpack.c.h.b16 %v138
  %v1309 = vunpack.c.l.b16 %v139
  %v1310 = vunpack.c.h.b16 %v139
  %v1311 = vunpack.c.l.b16 %v140
  %v1312 = vunpack.c.h.b16 %v140
  %v1313 = vunpack.c.l.b16 %v141
  %v1314 = vunpack.c.h.b16 %v141
  %v1315 = vunpack.c.l.b16 %v142
  %v1316 = vunpack.c.h.b16 %v142
  %v1317 = vunpack.c.l.b16 %v143
  %v1318 = vunpack.c.h.b16 %v143
  %v1319 = vunpack.c.l.b16 %v144
  %v1320 = vunpack.c.h.b16 %v144
  %v1321 = vunpack.c.l.b16 %v145
  %v1322 = vunpack.c.h.b16 %v145
  %v1323 = vunpack.c.l.b16 %v146
  %v1324 = vunpack.c.h.b16 %v146
  %v1325 = vunpack.c.l.b16 %v147
  %v1326 = vunpack.c.h.b16 %v147
  %v1327 = vunpack.c.l.b16 %v148
  %v1328 = vunpack.c.h.b16 %v148
  %v1329 = vunpack.c.l.b16 %v149
  %v1330 = vunpack.c.h.b16 %v149
  %v1331 = vunpack.c.l.b16 %v150
  %v1332 = vunpack.c.h.b16 %v150
  %v1333 = vunpack.c.l.b16 %v151
  %v1334 = vunpack.c.h.b16 %v151
  %v1335 = vunpack.c.l.b16 %v152
  %v1336 = vunpack.c.h.b16 %v152
  %v1337 = vunpack.c.l.b16 %v153
  %v1338 = vunpack.c.h.b16 %v153
  %v1339 = vunpack.c.l.b16 %v154
  %v1340 = vunpack.c.h.b16 %v154
  %v1341 = vunpack.c.l.b16 %v155
  %v1342 = vunpack.c.h.b16 %v155
  %v1343 = vunpack.c.l.b16 %v156
  %v1344 = vunpack.c.h.b16 %v156
  %v1345 = vunpack.c.l.b16 %v157
  %v1346 = vunpack.c.h.b16 %v157
  %v1347 = vunpack.c.l.b16 %v158
  %v1348 = vunpack.c.h.b16 %v158
  %v1349 = vunpack.c.l.b16 %v159
  %v1350 = vunpack.c.h.b16 %v159
  %v1351 = vunpack.c.l.b16 %v160
  %v1352 = vunpack.c.h.b16 %v160
  %v1353 = vunpack.c.l.b16 %v161
  %v1354 = vunpack.c.h.b16 %v161
  %v1355 = vunpack.c.l.b16 %v162
  %v1356 = vunpack.c.h.b16 %v162
  %v1357 = vunpack.c.l.b16 %v163
  %v1358 = vunpack.c.h.b16 %v163
  %v1359 = vunpack.c.l.b16 %v164
  %v1360 = vunpack.c.h.b16 %v164
  %v1361 = vunpack.c.l.b16 %v165
  %v1362 = vunpack.c.h.b16 %v165
  %v1363 = vunpack.c.l.b16 %v166
  %v1364 = vunpack.c.h.b16 %v166
  %v1365 = vunpack.c.l.b16 %v167
  %v1366 = vunpack.c.h.b16 %v167
  %v1367 = vunpack.c.l.b16 %v168
  %v1368 = vunpack.c.h.b16 %v168
  %v1369 = vunpack.c.l.b16 %v169
  %v1370 = vunpack.c.h.b16 %v169
  %v1371 = vunpack.c.l.b16 %v170
  %v1372 = vunpack.c.h.b16 %v170
  %v1373 = vunpack.c.l.b16 %v171
  %v1374 = vunpack.c.h.b16 %v171
  %v1375 = vunpack.c.l.b16 %v172
  %v1376 = vunpack.c.h.b16 %v172
  %v1377 = vunpack.c.l.b16 %v173
  %v1378 = vunpack.c.h.b16 %v173
  %v1379 = vunpack.c.l.b16 %v174
  %v1380 = vunpack.c.h.b16 %v174
  %v1381 = vunpack.c.l.b16 %v175
  %v1382 = vunpack.c.h.b16 %v175
  %v1383 = vunpack.c.l.b16 %v176
  %v1384 = vunpack.c.h.b16 %v176
  %v1385 = vunpack.c.l.b16 %v177
  %v1386 = vunpack.c.h.b16 %v177
  %v1387 = vunpack.c.l.b16 %v178
  %v1388 = vunpack.c.h.b16 %v178
  %v1389 = vunpack.c.l.b16 %v179
  %v1390 = vunpack.c.h.b16 %v179
  %v1391 = vunpack.c.l.b16 %v180
  %v1392 = vunpack.c.h.b16 %v180
  %v1393 = vunpack.c.l.b16 %v181
  %v1394 = vunpack.c.h.b16 %v181
  %v1395 = vunpack.c.l.b16 %v182
  %v1396 = vunpack.c.h.b16 %v182
  %v1397 = vunpack.c.l.b16 %v183
  %v1398 = vunpack.c.h.b16 %v183
  %v1399 = vunpack.c.l.b16 %v184
  %v1400 = vunpack.c.h.b16 %v184
  %v1401 = vunpack.c.l.b16 %v185
  %v1402 = vunpack.c.h.b16 %v185
  %v1403 = vunpack.c.l.b16 %v186
  %v1404 = vunpack.c.h.b16 %v186
  %v1405 = vunpack.c.l.b16 %v187
  %v1406 = vunpack.c.h.b16 %v187
  %v1407 = vunpack.c.l.b16 %v188
  %v1408 = vunpack.c.h.b16 %v188
  %v1409 = vunpack.c.l.b16 %v189
  %v1410 = vunpack.c.h.b16 %v189
  %v1411 = vunpack.c.l.b16 %v190
  %v1412 = vunpack.c.h.b16 %v190
  %v1413 = vunpack.c.l.b16 %v191
  %v1414 = vunpack.c.h.b16 %v191
  %v1415 = vunpack.c.l.b16 %v192
  %v1416 = vunpack.c.h.b16 %v192
  %v1417 = vunpack.c.l.b16 %v193
  %v1418 = vunpack.c.h.b16 %v193
  %v1419 = vunpack.c.l.b16 %v194
  %v1420 = vunpack.c.h.b16 %v194
  %v1421 = vunpack.c.l.b16 %v195
  %v1422 = vunpack.c.h.b16 %v195
  %v1423 = vunpack.c.l.b16 %v196
  %v1424 = vunpack.c.h.b16 %v196
  %v1425 = vunpack.c.l.b16 %v197
  %v1426 = vunpack.c.h.b16 %v197
  %v1427 = vunpack.c.l.b16 %v198
  %v1428 = vunpack.c.h.b16 %v198
  %v1429 = vunpack.c.l.b16 %v199
  %v1430 = vunpack.c.h.b16 %v199
  %v1431 = vunpack.c.l.b16 %v200
  %v1432 = vunpack.c.h.b16 %v200
  %v1433 = vunpack.c.l.b16 %v201
  %v1434 = vunpack.c.h.b16 %v201
  %v1435 = vunpack.c.l.b16 %v202
  %v1436 = vunpack.c.h.b16 %v202
  %v1437 = vunpack.c.l.b16 %v203
  %v1438 = vunpack.c.h.b16 %v203
  %v1439 = vunpack.c.l.b16 %v204
  %v1440 = vunpack.c.h.b16 %v204
  %v1441 = vunpack.c.l.b16 %v205
  %v1442 = vunpack.c.h.b16 %v205
  %v1443 = vunpack.c.l.b16 %v206
  %v1444 = vunpack.c.h.b16 %v206
  %v1445 = vunpack.c.l.b16 %v207
  %v1446 = vunpack.c.h.b16 %v207
  %v1447 = vunpack.c.l.b16 %v208
  %v1448 = vunpack.c.h.b16 %v208
  %v1449 = vunpack.c.l.b16 %v209
  %v1450 = vunpack.c.h.b16 %v209
  %v1451 = vunpack.c.l.b16 %v210
  %v1452 = vunpack.c.h.b16 %v210
  %v1453 = vunpack.c.l.b16 %v211
  %v1454 = vunpack.c.h.b16 %v211
  %v1455 = vunpack.c.l.b16 %v212
  %v1456 = vunpack.c.h.b16 %v212
  %v1457 = vunpack.c.l.b16 %v213
  %v1458 = vunpack.c.h.b16 %v213
  %v1459 = vunpack.c.l.b16 %v214
  %v1460 = vunpack.c.h.b16 %v214
  %v1461 = vunpack.c.l.b16 %v215
  %v1462 = vunpack.c.h.b16 %v215
  %v1463 = vunpack.c.l.b16 %v216
  %v1464 = vunpack.c.h.b16 %v216
  %v1465 = vunpack.c.l.b16 %v217
  %v1466 = vunpack.c.h.b16 %v217
  %v1467 = vunpack.c.l.b16 %v218
  %v1468 = vunpack.c.h.b16 %v218
  %v1469 = vunpack.c.l.b16 %v219
  %v1470 = vunpack.c.h.b16 %v219
  %v1471 = vunpack.c.l.b16 %v220
  %v1472 = vunpack.c.h.b16 %v220
  %v1473 = vunpack.c.l.b16 %v221
  %v1474 = vunpack.c.h.b16 %v221
  %v1475 = vunpack.c.l.b16 %v222
  %v1476 = vunpack.c.h.b16 %v222
  %v1477 = vunpack.c.l.b16 %v223
  %v1478 = vunpack.c.h.b16 %v223
  %v1479 = vunpack.c.l.b16 %v224
  %v1480 = vunpack.c.h.b16 %v224
  %v1481 = vunpack.c.l.b16 %v225
  %v1482 = vunpack.c.h.b16 %v225
  %v1483 = vunpack.c.l.b16 %v226
  %v1484 = vunpack.c.h.b16 %v226
  %v1485 = vunpack.c.l.b16 %v227
  %v1486 = vunpack.c.h.b16 %v227
  %v1487 = vunpack.c.l.b16 %v228
  %v1488 = vunpack.c.h.b16 %v228
  %v1489 = vunpack.c.l.b16 %v229
  %v1490 = vunpack.c.h.b16 %v229
  %v1491 = vunpack.c.l.b16 %v230
  %v1492 = vunpack.c.h.b16 %v230
  %v1493 = vunpack.c.l.b16 %v231
  %v1494 = vunpack.c.h.b16 %v231
  %v1495 = vunpack.c.l.b16 %v232
  %v1496 = vunpack.c.h.b16 %v232
  %v1497 = vunpack.c.l.b16 %v233
  %v1498 = vunpack.c.h.b16 %v233
  %v1499 = vunpack.c.l.b16 %v234
  %v1500 = vunpack.c.h.b16 %v234
  %v1501 = vunpack.c.l.b16 %v235
  %v1502 = vunpack.c.h.b16 %v235
  %v1503 = vunpack.c.l.b16 %v236
  %v1504 = vunpack.c.h.b16 %v236
  %v1505 = vunpack.c.l.b16 %v237
  %v1506 = vunpack.c.h.b16 %v237
  %v1507 = vunpack.c.l.b16 %v238
  %v1508 = vunpack.c.h.b16 %v238
  %v1509 = vunpack.c.l.b16 %v239
  %v1510 = vunpack.c.h.b16 %v239
  %v1511 = vunpack.c.l.b16 %v240
  %v1512 = vunpack.c.h.b16 %v240
  %v1513 = vunpack.c.l.b16 %v241
  %v1514 = vunpack.c.h.b16 %v241
  %v1515 = vunpack.c.l.b16 %v242
  %v1516 = vunpack.c.h.b16 %v242
  %v1517 = vunpack.c.l.b16 %v243
  %v1518 = vunpack.c.h.b16 %v243
  %v1519 = vunpack.c.l.b16 %v244
  %v1520 = vunpack.c.h.b16 %v244
  %v1521 = vunpack.c.l.b16 %v245
  %v1522 = vunpack.c.h.b16 %v245
  %v1523 = vunpack.c.l.b16 %v246
  %v1524 = vunpack.c.h.b16 %v246
  %v1525 = vunpack.c.l.b16 %v247
  %v1526 = vunpack.c.h.b16 %v247
  %v1527 = vunpack.c.l.b16 %v248
  %v1528 = vunpack.c.h.b16 %v248
  %v1529 = vunpack.c.l.b16 %v249
  %v1530 = vunpack.c.h.b16 %v249
  %v1531 = vunpack.c.l.b16 %v250
  %v1532 = vunpack.c.h.b16 %v250
  %v1533 = vunpack.c.l.b16 %v251
  %v1534 = vunpack.c.h.b16 %v251
  %v1535 = vunpack.c.l.b16 %v252
  %v1536 = vunpack.c.h.b16 %v252
  %v1537 = vunpack.c.l.b16 %v253
  %v1538 = vunpack.c.h.b16 %v253
  %v1539 = vunpack.c.l.b16 %v254
  %v1540 = vunpack.c.h.b16 %v254
  %v1541 = vunpack.c.l.b16 %v255
  %v1542 = vunpack.c.h.b16 %v255
  %v1543 = vunpack.c.l.b16 %v256
  %v1544 = vunpack.c.h.b16 %v256
  %v1545 = vunpack.c.l.b16 %v257
  %v1546 = vunpack.c.h.b16 %v257
  %v1547 = vunpack.c.l.b16 %v258
  %v1548 = vunpack.c.h.b16 %v258
  %v1549 = vunpack.c.l.b16 %v259
  %v1550 = vunpack.c.h.b16 %v259
  %v1551 = vunpack.c.l.b16 %v260
  %v1552 = vunpack.c.h.b16 %v260
  %v1553 = vunpack.c.l.b16 %v261
  %v1554 = vunpack.c.h.b16 %v261
  %v1555 = vunpack.c.l.b16 %v262
  %v1556 = vunpack.c.h.b16 %v262
  %v1557 = vunpack.c.l.b16 %v263
  %v1558 = vunpack.c.h.b16 %v263
  %v1559 = vunpack.c.l.b16 %v264
  %v1560 = vunpack.c.h.b16 %v264
  %v1561 = vunpack.c.l.b16 %v265
  %v1562 = vunpack.c.h.b16 %v265
  %v1563 = vunpack.c.l.b16 %v266
  %v1564 = vunpack.c.h.b16 %v266
  %v1565 = vunpack.c.l.b16 %v267
  %v1566 = vunpack.c.h.b16 %v267
  %v1567 = vunpack.c.l.b16 %v268
  %v1568 = vunpack.c.h.b16 %v268
  %v1569 = vunpack.c.l.b16 %v269
  %v1570 = vunpack.c.h.b16 %v269
  %v1571 = vunpack.c.l.b16 %v270
  %v1572 = vunpack.c.h.b16 %v270
  %v1573 = vunpack.c.l.b16 %v271
  %v1574 = vunpack.c.h.b16 %v271
  %v1575 = vunpack.c.l.b16 %v272
  %v1576 = vunpack.c.h.b16 %v272
  %v1577 = vunpack.c.l.b16 %v273
  %v1578 = vunpack.c.h.b16 %v273
  %v1579 = vunpack.c.l.b16 %v274
  %v1580 = vunpack.c.h.b16 %v274
  %v1581 = vunpack.c.l.b16 %v275
  %v1582 = vunpack.c.h.b16 %v275
  %v1583 = vunpack.c.l.b16 %v276
  %v1584 = vunpack.c.h.b16 %v276
  %v1585 = vunpack.c.l.b16 %v277
  %v1586 = vunpack.c.h.b16 %v277
  %v1587 = vunpack.c.l.b16 %v278
  %v1588 = vunpack.c.h.b16 %v278
  %v1589 = vunpack.c.l.b16 %v279
  %v1590 = vunpack.c.h.b16 %v279
  %v1591 = vunpack.c.l.b16 %v280
  %v1592 = vunpack.c.h.b16 %v280
  %v1593 = vunpack.c.l.b16 %v281
  %v1594 = vunpack.c.h.b16 %v281
  %v1595 = vunpack.c.l.b16 %v282
  %v1596 = vunpack.c.h.b16 %v282
  %v1597 = vunpack.c.l.b16 %v283
  %v1598 = vunpack.c.h.b16 %v283
  %v1599 = vunpack.c.l.b16 %v284
  %v1600 = vunpack.c.h.b16 %v284
  %v1601 = vunpack.c.l.b16 %v285
  %v1602 = vunpack.c.h.b16 %v285
  %v1603 = vunpack.c.l.b16 %v286
  %v1604 = vunpack.c.h.b16 %v286
  %v1605 = vunpack.c.l.b16 %v287
  %v1606 = vunpack.c.h.b16 %v287
  %v1607 = vunpack.c.l.b16 %v288
  %v1608 = vunpack.c.h.b16 %v288
  %v1609 = vunpack.c.l.b16 %v289
  %v1610 = vunpack.c.h.b16 %v289
  %v1611 = vunpack.c.l.b16 %v290
  %v1612 = vunpack.c.h.b16 %v290
  %v1613 = vunpack.c.l.b16 %v291
  %v1614 = vunpack.c.h.b16 %v291
  %v1615 = vunpack.c.l.b16 %v292
  %v1616 = vunpack.c.h.b16 %v292
  %v1617 = vunpack.c.l.b16 %v293
  %v1618 = vunpack.c.h.b16 %v293
  %v1619 = vunpack.c.l.b16 %v294
  %v1620 = vunpack.c.h.b16 %v294
  %v1621 = vunpack.c.l.b16 %v295
  %v1622 = vunpack.c.h.b16 %v295
  %v1623 = vunpack.c.l.b16 %v296
  %v1624 = vunpack.c.h.b16 %v296
  %v1625 = vunpack.c.l.b16 %v297
  %v1626 = vunpack.c.h.b16 %v297
  %v1627 = vunpack.c.l.b16 %v298
  %v1628 = vunpack.c.h.b16 %v298
  %v1629 = vunpack.c.l.b16 %v299
  %v1630 = vunpack.c.h.b16 %v299
  %v1631 = vunpack.c.l.b16 %v300
  %v1632 = vunpack.c.h.b16 %v300
  %v1633 = vunpack.c.l.b16 %v301
  %v1634 = vunpack.c.h.b16 %v301
  %v1635 = vunpack.c.l.b16 %v302
  %v1636 = vunpack.c.h.b16 %v302
  %v1637 = vunpack.c.l.b16 %v303
  %v1638 = vunpack.c.h.b16 %v303
  %v1639 = vunpack.c.l.b16 %v304
  %v1640 = vunpack.c.h.b16 %v304
  %v1641 = vunpack.c.l.b16 %v305
  %v1642 = vunpack.c.h.b16 %v305
  %v1643 = vunpack.c.l.b16 %v306
  %v1644 = vunpack.c.h.b16 %v306
  %v1645 = vunpack.c.l.b16 %v307
  %v1646 = vunpack.c.h.b16 %v307
  %v1647 = vunpack.c.l.b16 %v308
  %v1648 = vunpack.c.h.b16 %v308
  %v1649 = vunpack.c.l.b16 %v309
  %v1650 = vunpack.c.h.b16 %v309
  %v1651 = vunpack.c.l.b16 %v310
  %v1652 = vunpack.c.h.b16 %v310
  %v1653 = vunpack.c.l.b16 %v311
  %v1654 = vunpack.c.h.b16 %v311
  %v1655 = vunpack.c.l.b16 %v312
  %v1656 = vunpack.c.h.b16 %v312
  %v1657 = vunpack.c.l.b16 %v313
  %v1658 = vunpack.c.h.b16 %v313
  %v1659 = vunpack.c.l.b16 %v314
  %v1660 = vunpack.c.h.b16 %v314
  %v1661 = vunpack.c.l.b16 %v315
  %v1662 = vunpack.c.h.b16 %v315
  %v1663 = vunpack.c.l.b16 %v316
  %v1664 = vunpack.c.h.b16 %v316
  %v1665 = vunpack.c.l.b16 %v317
  %v1666 = vunpack.c.h.b16 %v317
  %v1667 = vunpack.c.l.b16 %v318
  %v1668 = vunpack.c.h.b16 %v318
  %v1669 = vunpack.c.l.b16 %v319
  %v1670 = vunpack.c.h.b16 %v319
  %v1671 = vunpack.c.l.b16 %v320
  %v1672 = vunpack.c.h.b16 %v320
  %v1673 = vunpack.c.l.b16 %v321
  %v1674 = vunpack.c.h.b16 %v321
  %v1675 = vunpack.c.l.b16 %v322
  %v1676 = vunpack.c.h.b16 %v322
  %v1677 = vunpack.c.l.b16 %v323
  %v1678 = vunpack.c.h.b16 %v323
  %v1679 = vunpack.c.l.b16 %v324
  %v1680 = vunpack.c.h.b16 %v324
  %v1681 = vunpack.c.l.b16 %v325
  %v1682 = vunpack.c.h.b16 %v325
  %v1683 = vunpack.c.l.b16 %v326
  %v1684 = vunpack.c.h.b16 %v326
  %v1685 = vunpack.c.l.b16 %v327
  %v1686 = vunpack.c.h.b16 %v327
  %v1687 = vunpack.c.l.b16 %v328
  %v1688 = vunpack.c.h.b16 %v328
  %v1689 = vunpack.c.l.b16 %v329
  %v1690 = vunpack.c.h.b16 %v329
  %v1691 = vunpack.c.l.b16 %v330
  %v1692 = vunpack.c.h.b16 %v330
  %v1693 = vunpack.c.l.b16 %v331
  %v1694 = vunpack.c.h.b16 %v331
  %v1695 = vunpack.c.l.b16 %v332
  %v1696 = vunpack.c.h.b16 %v332
  %v1697 = vunpack.c.l.b16 %v333
  %v1698 = vunpack.c.h.b16 %v333
  %v1699 = vunpack.c.l.b16 %v334
  %v1700 = vunpack.c.h.b16 %v334
  %v1701 = vunpack.c.l.b16 %v335
  %v1702 = vunpack.c.h.b16 %v335
  %v1703 = vunpack.c.l.b16 %v336
  %v1704 = vunpack.c.h.b16 %v336
  %v1705 = vunpack.c.l.b16 %v337
  %v1706 = vunpack.c.h.b16 %v337
  %v1707 = vunpack.c.l.b16 %v338
  %v1708 = vunpack.c.h.b16 %v338
  %v1709 = vunpack.c.l.b16 %v339
  %v1710 = vunpack.c.h.b16 %v339
  %v1711 = vunpack.c.l.b16 %v340
  %v1712 = vunpack.c.h.b16 %v340
  %v1713 = vunpack.c.l.b16 %v341
  %v1714 = vunpack.c.h.b16 %v341
  %v1715 = vunpack.c.l.b16 %v342
  %v1716 = vunpack.c.h.b16 %v342
  %v1717 = vunpack.c.l.b16 %v343
  %v1718 = vunpack.c.h.b16 %v343
  %v1719 = vunpack.c.l.b16 %v344
  %v1720 = vunpack.c.h.b16 %v344
  %v1721 = vunpack.c.l.b16 %v345
  %v1722 = vunpack.c.h.b16 %v345
  %v1723 = vunpack.c.l.b16 %v346
  %v1724 = vunpack.c.h.b16 %v346
  %v1725 = vunpack.c.l.b16 %v347
  %v1726 = vunpack.c.h.b16 %v347
  %v1727 = vunpack.c.l.b16 %v348
  %v1728 = vunpack.c.h.b16 %v348
  %v1729 = vunpack.c.l.b16 %v349
  %v1730 = vunpack.c.h.b16 %v349
  %v1731 = vunpack.c.l.b16 %v350
  %v1732 = vunpack.c.h.b16 %v350
  %v1733 = vunpack.c.l.b16 %v351
  %v1734 = vunpack.c.h.b16 %v351
  %v1735 = vunpack.c.l.b16 %v352
  %v1736 = vunpack.c.h.b16 %v352
  %v1737 = vunpack.c.l.b16 %v353
  %v1738 = vunpack.c.h.b16 %v353
  %v1739 = vunpack.c.l.b16 %v354
  %v1740 = vunpack.c.h.b16 %v354
  %v1741 = vunpack.c.l.b16 %v355
  %v1742 = vunpack.c.h.b16 %v355
  %v1743 = vunpack.c.l.b16 %v356
  %v1744 = vunpack.c.h.b16 %v356
  %v1745 = vunpack.c.l.b16 %v357
  %v1746 = vunpack.c.h.b16 %v357
  %v1747 = vunpack.c.l.b16 %v358
  %v1748 = vunpack.c.h.b16 %v358
  %v1749 = vunpack.c.l.b16 %v359
  %v1750 = vunpack.c.h.b16 %v359
  %v1751 = vunpack.c.l.b16 %v360
  %v1752 = vunpack.c.h.b16 %v360
  %v1753 = vunpack.c.l.b16 %v361
  %v1754 = vunpack.c.h.b16 %v361
  %v1755 = vunpack.c.l.b16 %v362
  %v1756 = vunpack.c.h.b16 %v362
  %v1757 = vunpack.c.l.b16 %v363
  %v1758 = vunpack.c.h.b16 %v363
  %v1759 = vunpack.c.l.b16 %v364
  %v1760 = vunpack.c.h.b16 %v364
  %v1761 = vunpack.c.l.b16 %v365
  %v1762 = vunpack.c.h.b16 %v365
  %v1763 = vunpack.c.l.b16 %v366
  %v1764 = vunpack.c.h.b16 %v366
  %v1765 = vunpack.c.l.b16 %v367
  %v1766 = vunpack.c.h.b16 %v367
  %v1767 = vunpack.c.l.b16 %v368
  %v1768 = vunpack.c.h.b16 %v368
  %v1769 = vunpack.c.l.b16 %v369
  %v1770 = vunpack.c.h.b16 %v369
  %v1771 = vunpack.c.l.b16 %v370
  %v1772 = vunpack.c.h.b16 %v370
  %v1773 = vunpack.c.l.b16 %v371
  %v1774 = vunpack.c.h.b16 %v371
  %v1775 = vunpack.c.l.b16 %v372
  %v1776 = vunpack.c.h.b16 %v372
  %v1777 = vunpack.c.l.b16 %v373
  %v1778 = vunpack.c.h.b16 %v373
  %v1779 = vunpack.c.l.b16 %v374
  %v1780 = vunpack.c.h.b16 %v374
  %v1781 = vunpack.c.l.b16 %v375
  %v1782 = vunpack.c.h.b16 %v375
  %v1783 = vunpack.c.l.b16 %v376
  %v1784 = vunpack.c.h.b16 %v376
  %v1785 = vunpack.c.l.b16 %v377
  %v1786 = vunpack.c.h.b16 %v377
  %v1787 = vunpack.c.l.b16 %v378
  %v1788 = vunpack.c.h.b16 %v378
  %v1789 = vunpack.c.l.b16 %v379
  %v1790 = vunpack.c.h.b16 %v379
  %v1791 = vunpack.c.l.b16 %v380
  %v1792 = vunpack.c.h.b16 %v380
  %v1793 = vunpack.c.l.b16 %v381
  %v1794 = vunpack.c.h.b16 %v381
  %v1795 = vunpack.c.l.b16 %v382
  %v1796 = vunpack.c.h.b16 %v382
  %v1797 = vunpack.c.l.b16 %v383
  %v1798 = vunpack.c.h.b16 %v383
  %v1799 = vunpack.c.l.b16 %v384
  %v1800 = vunpack.c.h.b16 %v384
  %v1801 = vunpack.c.l.b16 %v385
  %v1802 = vunpack.c.h.b16 %v385
  %v1803 = vunpack.c.l.b16 %v386
  %v1804 = vunpack.c.h.b16 %v386
  %v1805 = vunpack.c.l.b16 %v387
  %v1806 = vunpack.c.h.b16 %v387
  %v1807 = vunpack.c.l.b16 %v388
  %v1808 = vunpack.c.h.b16 %v388
  %v1809 = vunpack.c.l.b16 %v389
  %v1810 = vunpack.c.h.b16 %v389
  %v1811 = vunpack.c.l.b16 %v390
  %v1812 = vunpack.c.h.b16 %v390
  %v1813 = vunpack.c.l.b16 %v391
  %v1814 = vunpack.c.h.b16 %v391
  %v1815 = vunpack.c.l.b16 %v392
  %v1816 = vunpack.c.h.b16 %v392
  %v1817 = vunpack.c.l.b16 %v393
  %v1818 = vunpack.c.h.b16 %v393
  %v1819 = vunpack.c.l.b16 %v394
  %v1820 = vunpack.c.h.b16 %v394
  %v1821 = vunpack.c.l.b16 %v395
  %v1822 = vunpack.c.h.b16 %v395
  %v1823 = vunpack.c.l.b16 %v396
  %v1824 = vunpack.c.h.b16 %v396
  %v1825 = vunpack.c.l.b16 %v397
  %v1826 = vunpack.c.h.b16 %v397
  %v1827 = vunpack.c.l.b16 %v398
  %v1828 = vunpack.c.h.b16 %v398
  %v1829 = vunpack.c.l.b16 %v399
  %v1830 = vunpack.c.h.b16 %v399
  %v1831 = vunpack.c.l.b16 %v400
  %v1832 = vunpack.c.h.b16 %v400
  %v1833 = vunpack.c.l.b16 %v401
  %v1834 = vunpack.c.h.b16 %v401
  %v1835 = vunpack.c.l.b16 %v402
  %v1836 = vunpack.c.h.b16 %v402
  %v1837 = vunpack.c.l.b16 %v403
  %v1838 = vunpack.c.h.b16 %v403
  %v1839 = vunpack.c.l.b16 %v404
  %v1840 = vunpack.c.h.b16 %v404
  %v1841 = vunpack.c.l.b16 %v405
  %v1842 = vunpack.c.h.b16 %v405
  %v1843 = vunpack.c.l.b16 %v406
  %v1844 = vunpack.c.h.b16 %v406
  %v1845 = vunpack.c.l.b16 %v407
  %v1846 = vunpack.c.h.b16 %v407
  %v1847 = vunpack.c.l.b16 %v408
  %v1848 = vunpack.c.h.b16 %v408
  %v1849 = vunpack.c.l.b16 %v409
  %v1850 = vunpack.c.h.b16 %v409
  %v1851 = vunpack.c.l.b16 %v410
  %v1852 = vunpack.c.h.b16 %v410
  %v1853 = vunpack.c.l.b16 %v411
  %v1854 = vunpack.c.h.b16 %v411
  %v1855 = vunpack.c.l.b16 %v412
  %v1856 = vunpack.c.h.b16 %v412
  %v1857 = vunpack.c.l.b16 %v413
  %v1858 = vunpack.c.h.b16 %v413
  %v1859 = vunpack.c.l.b16 %v414
  %v1860 = vunpack.c.h.b16 %v414
  %v1861 = vunpack.c.l.b16 %v415
  %v1862 = vunpack.c.h.b16 %v415
  %v1863 = vunpack.c.l.b16 %v416
  %v1864 = vunpack.c.h.b16 %v416
  %v1865 = vunpack.c.l.b16 %v417
  %v1866 = vunpack.c.h.b16 %v417
  %v1867 = vunpack.c.l.b16 %v418
  %v1868 = vunpack.c.h.b16 %v418
  %v1869 = vunpack.c.l.b16 %v419
  %v1870 = vunpack.c.h.b16 %v419
  %v1871 = vunpack.c.l.b16 %v420
  %v1872 = vunpack.c.h.b16 %v420
  %v1873 = vunpack.c.l.b16 %v421
  %v1874 = vunpack.c.h.b16 %v421
  %v1875 = vunpack.c.l.b16 %v422
  %v1876 = vunpack.c.h.b16 %v422
  %v1877 = vunpack.c.l.b16 %v423
  %v1878 = vunpack.c.h.b16 %v423
  %v1879 = vunpack.c.l.b16 %v424
  %v1880 = vunpack.c.h.b16 %v424
  %v1881 = vunpack.c.l.b16 %v425
  %v1882 = vunpack.c.h.b16 %v425
  %v1883 = vunpack.c.l.b16 %v426
  %v1884 = vunpack.c.h.b16 %v426
  %v1885 = vunpack.c.l.b16 %v427
  %v1886 = vunpack.c.h.b16 %v427
  %v1887 = vunpack.c.l.b16 %v428
  %v1888 = vunpack.c.h.b16 %v428
  %v1889 = vunpack.c.l.b16 %v429
  %v1890 = vunpack.c.h.b16 %v429
  %v1891 = vunpack.c.l.b16 %v430
  %v1892 = vunpack.c.h.b16 %v430
  %v1893 = vunpack.c.l.b16 %v431
  %v1894 = vunpack.c.h.b16 %v431
  %v1895 = vunpack.c.l.b16 %v432
  %v1896 = vunpack.c.h.b16 %v432
  %v1897 = vunpack.c.l.b16 %v433
  %v1898 = vunpack.c.h.b16 %v433
  %v1899 = vunpack.c.l.b16 %v434
  %v1900 = vunpack.c.h.b16 %v434
  %v1901 = vunpack.c.l.b16 %v435
  %v1902 = vunpack.c.h.b16 %v435
  %v1903 = vunpack.c.l.b16 %v436
  %v1904 = vunpack.c.h.b16 %v436
  %v1905 = vunpack.c.l.b16 %v437
  %v1906 = vunpack.c.h.b16 %v437
  %v1907 = vunpack.c.l.b16 %v438
  %v1908 = vunpack.c.h.b16 %v438
  %v1909 = vunpack.c.l.b16 %v439
  %v1910 = vunpack.c.h.b16 %v439
  %v1911 = vunpack.c.l.b16 %v440
  %v1912 = vunpack.c.h.b16 %v440
  %v1913 = vunpack.c.l.b16 %v441
  %v1914 = vunpack.c.h.b16 %v441
  %v1915 = vunpack.c.l.b16 %v442
  %v1916 = vunpack.c.h.b16 %v442
  %v1917 = vunpack.c.l.b16 %v443
  %v1918 = vunpack.c.h.b16 %v443
  %v1919 = vunpack.c.l.b16 %v444
  %v1920 = vunpack.c.h.b16 %v444
  %v1921 = vunpack.c.l.b16 %v445
  %v1922 = vunpack.c.h.b16 %v445
  %v1923 = vunpack.c.l.b16 %v446
  %v1924 = vunpack.c.h.b16 %v446
  %v1925 = vunpack.c.l.b16 %v447
  %v1926 = vunpack.c.h.b16 %v447
  %v1927 = vunpack.c.l.b16 %v448
  %v1928 = vunpack.c.h.b16 %v448
  %v1929 = vunpack.c.l.b16 %v449
  %v1930 = vunpack.c.h.b16 %v449
  %v1931 = vunpack.c.l.b16 %v450
  %v1932 = vunpack.c.h.b16 %v450
  %v1933 = vunpack.c.l.b16 %v451
  %v1934 = vunpack.c.h.b16 %v451
  %v1935 = vunpack.c.l.b16 %v452
  %v1936 = vunpack.c.h.b16 %v452
  %v1937 = vunpack.c.l.b16 %v453
  %v1938 = vunpack.c.h.b16 %v453
  %v1939 = vunpack.c.l.b16 %v454
  %v1940 = vunpack.c.h.b16 %v454
  %v1941 = vunpack.c.l.b16 %v455
  %v1942 = vunpack.c.h.b16 %v455
  %v1943 = vunpack.c.l.b16 %v456
  %v1944 = vunpack.c.h.b16 %v456
  %v1945 = vunpack.c.l.b16 %v457
  %v1946 = vunpack.c.h.b16 %v457
  %v1947 = vunpack.c.l.b16 %v458
  %v1948 = vunpack.c.h.b16 %v458
  %v1949 = vunpack.c.l.b16 %v459
  %v1950 = vunpack.c.h.b16 %v459
  %v1951 = vunpack.c.l.b16 %v460
  %v1952 = vunpack.c.h.b16 %v460
  %v1953 = vunpack.c.l.b16 %v461
  %v1954 = vunpack.c.h.b16 %v461
  %v1955 = vunpack.c.l.b16 %v462
  %v1956 = vunpack.c.h.b16 %v462
  %v1957 = vunpack.c.l.b16 %v463
  %v1958 = vunpack.c.h.b16 %v463
  %v1959 = vunpack.c.l.b16 %v464
  %v1960 = vunpack.c.h.b16 %v464
  %v1961 = vunpack.c.l.b16 %v465
  %v1962 = vunpack.c.h.b16 %v465
  %v1963 = vunpack.c.l.b16 %v466
  %v1964 = vunpack.c.h.b16 %v466
  %v1965 = vunpack.c.l.b16 %v467
  %v1966 = vunpack.c.h.b16 %v467
  %v1967 = vunpack.c.l.b16 %v468
  %v1968 = vunpack.c.h.b16 %v468
  %v1969 = vunpack.c.l.b16 %v469
  %v1970 = vunpack.c.h.b16 %v469
  %v1971 = vunpack.c.l.b16 %v470
  %v1972 = vunpack.c.h.b16 %v470
  %v1973 = vunpack.c.l.b16 %v471
  %v1974 = vunpack.c.h.b16 %v471
  %v1975 = vunpack.c.l.b16 %v472
  %v1976 = vunpack.c.h.b16 %v472
  %v1977 = vunpack.c.l.b16 %v473
  %v1978 = vunpack.c.h.b16 %v473
  %v1979 = vunpack.c.l.b16 %v474
  %v1980 = vunpack.c.h.b16 %v474
  %v1981 = vunpack.c.l.b16 %v475
  %v1982 = vunpack.c.h.b16 %v475
  %v1983 = vunpack.c.l.b16 %v476
  %v1984 = vunpack.c.h.b16 %v476
  %v1985 = vunpack.c.l.b16 %v477
  %v1986 = vunpack.c.h.b16 %v477
  %v1987 = vunpack.c.l.b16 %v478
  %v1988 = vunpack.c.h.b16 %v478
  %v1989 = vunpack.c.l.b16 %v479
  %v1990 = vunpack.c.h.b16 %v479
  %v1991 = vunpack.c.l.b16 %v480
  %v1992 = vunpack.c.h.b16 %v480
  %v1993 = vunpack.c.l.b16 %v481
  %v1994 = vunpack.c.h.b16 %v481
  %v1995 = vunpack.c.l.b16 %v482
  %v1996 = vunpack.c.h.b16 %v482
  %v1997 = vunpack.c.l.b16 %v483
  %v1998 = vunpack.c.h.b16 %v483
  %v1999 = vunpack.c.l.b16 %v484
  %v2000 = vunpack.c.h.b16 %v484
  %v2001 = vunpack.c.l.b16 %v485
  %v2002 = vunpack.c.h.b16 %v485
  %v2003 = vunpack.c.l.b16 %v486
  %v2004 = vunpack.c.h.b16 %v486
  %v2005 = vunpack.c.l.b16 %v487
  %v2006 = vunpack.c.h.b16 %v487
  %v2007 = vunpack.c.l.b16 %v488
  %v2008 = vunpack.c.h.b16 %v488
  %v2009 = vunpack.c.l.b16 %v489
  %v2010 = vunpack.c.h.b16 %v489
  %v2011 = vunpack.c.l.b16 %v490
  %v2012 = vunpack.c.h.b16 %v490
  %v2013 = vunpack.c.l.b16 %v491
  %v2014 = vunpack.c.h.b16 %v491
  %v2015 = vunpack.c.l.b16 %v492
  %v2016 = vunpack.c.h.b16 %v492
  %v2017 = vunpack.c.l.b16 %v493
  %v2018 = vunpack.c.h.b16 %v493
  %v2019 = vunpack.c.l.b16 %v494
  %v2020 = vunpack.c.h.b16 %v494
  %v2021 = vunpack.c.l.b16 %v495
  %v2022 = vunpack.c.h.b16 %v495
  %v2023 = vunpack.c.l.b16 %v496
  %v2024 = vunpack.c.h.b16 %v496
  %v2025 = vunpack.c.l.b16 %v497
  %v2026 = vunpack.c.h.b16 %v497
  %v2027 = vunpack.c.l.b16 %v498
  %v2028 = vunpack.c.h.b16 %v498
  %v2029 = vunpack.c.l.b16 %v499
  %v2030 = vunpack.c.h.b16 %v499
  %v2031 = vunpack.c.l.b16 %v500
  %v2032 = vunpack.c.h.b16 %v500
  %v2033 = vunpack.c.l.b16 %v501
  %v2034 = vunpack.c.h.b16 %v501
  %v2035 = vunpack.c.l.b16 %v502
  %v2036 = vunpack.c.h.b16 %v502
  %v2037 = vunpack.c.l.b16 %v503
  %v2038 = vunpack.c.h.b16 %v503
  %v2039 = vunpack.c.l.b16 %v504
  %v2040 = vunpack.c.h.b16 %v504
  %v2041 = vunpack.c.l.b16 %v505
  %v2042 = vunpack.c.h.b16 %v505
  %v2043 = vunpack.c.l.b16 %v506
  %v2044 = vunpack.c.h.b16 %v506
  %v2045 = vunpack.c.l.b16 %v507
  %v2046 = vunpack.c.h.b16 %v507
  %v2047 = vunpack.c.l.b16 %v508
  %v2048 = vunpack.c.h.b16 %v508
  %v2049 = vunpack.c.l.b16 %v509
  %v2050 = vunpack.c.h.b16 %v509
  %v2051 = vunpack.c.l.b16 %v510
  %v2052 = vunpack.c.h.b16 %v510
  %v2053 = vunpack.c.l.b16 %v511
  %v2054 = vunpack.c.h.b16 %v511
  %v2055 = vunpack.c.l.b16 %v512
  %v2056 = vunpack.c.h.b16 %v512
  %v2057 = vunpack.c.l.b16 %v513
  %v2058 = vunpack.c.h.b16 %v513
  %v2059 = vunpack.c.l.b16 %v514
  %v2060 = vunpack.c.h.b16 %v514
  %v2061 = vunpack.c.l.b16 %v515
  %v2062 = vunpack.c.h.b16 %v515
  %v2063 = vunpack.c.l.b16 %v516
  %v2064 = vunpack.c.h.b16 %v516
  %v2065 = vunpack.c.l.b16 %v517
  %v2066 = vunpack.c.h.b16 %v517
  %v2067 = vunpack.c.l.b16 %v518
  %v2068 = vunpack.c.h.b16 %v518
  %v2069 = vunpack.c.l.b16 %v519
  %v2070 = vunpack.c.h.b16 %v519
  %v2071 = vunpack.c.l.b16 %v520
  %v2072 = vunpack.c.h.b16 %v520
  %v2073 = vunpack.c.l.b16 %v521
  %v2074 = vunpack.c.h.b16 %v521
  %v2075 = vunpack.c.l.b16 %v522
  %v2076 = vunpack.c.h.b16 %v522
  %v2077 = vunpack.c.l.b16 %v523
  %v2078 = vunpack.c.h.b16 %v523
  %v2079 = vunpack.c.l.b16 %v524
  %v2080 = vunpack.c.h.b16 %v524
  %v2081 = vunpack.c.l.b16 %v525
  %v2082 = vunpack.c.h.b16 %v525
  %v2083 = vunpack.c.l.b16 %v526
  %v2084 = vunpack.c.h.b16 %v526
  %v2085 = vunpack.c.l.b16 %v527
  %v2086 = vunpack.c.h.b16 %v527
  %v2087 = vunpack.c.l.b16 %v528
  %v2088 = vunpack.c.h.b16 %v528
  %v2089 = vunpack.c.l.b16 %v529
  %v2090 = vunpack.c.h.b16 %v529
  %v2091 = vunpack.c.l.b16 %v530
  %v2092 = vunpack.c.h.b16 %v530
  %v2093 = vunpack.c.l.b16 %v531
  %v2094 = vunpack.c.h.b16 %v531
  %v2095 = vunpack.c.l.b16 %v532
  %v2096 = vunpack.c.h.b16 %v532
  %v2097 = vunpack.c.l.b16 %v533
  %v2098 = vunpack.c.h.b16 %v533
  %v2099 = vunpack.c.l.b16 %v534
  %v2100 = vunpack.c.h.b16 %v534
  %v2101 = vunpack.c.l.b16 %v535
  %v2102 = vunpack.c.h.b16 %v535
  %v2103 = vunpack.c.l.b16 %v536
  %v2104 = vunpack.c.h.b16 %v536
  %v2105 = vunpack.c.l.b16 %v537
  %v2106 = vunpack.c.h.b16 %v537
  %v2107 = vunpack.c.l.b16 %v538
  %v2108 = vunpack.c.h.b16 %v538
  %v2109 = vpack.c.b16 %v1093, %v1085
  %v2110 = vpack.c.b16 %v1094, %v1086
  %v2111 = vpack.c.b16 %v1095, %v1087
  %v2112 = vpack.c.b16 %v1096, %v1088
  %v2113 = vpack.c.b16 %v1097, %v1089
  %v2114 = vpack.c.b16 %v1098, %v1090
  %v2115 = vpack.c.b16 %v1099, %v1091
  %v2116 = vpack.c.b16 %v1100, %v1092
  %v2117 = vpack.c.b16 %v1109, %v1101
  %v2118 = vpack.c.b16 %v1110, %v1102
  %v2119 = vpack.c.b16 %v1111, %v1103
  %v2120 = vpack.c.b16 %v1112, %v1104
  %v2121 = vpack.c.b16 %v1113, %v1105
  %v2122 = vpack.c.b16 %v1114, %v1106
  %v2123 = vpack.c.b16 %v1115, %v1107
  %v2124 = vpack.c.b16 %v1116, %v1108
  %v2125 = vpack.c.b16 %v1125, %v1117
  %v2126 = vpack.c.b16 %v1126, %v1118
  %v2127 = vpack.c.b16 %v1127, %v1119
  %v2128 = vpack.c.b16 %v1128, %v1120
  %v2129 = vpack.c.b16 %v1129, %v1121
  %v2130 = vpack.c.b16 %v1130, %v1122
  %v2131 = vpack.c.b16 %v1131, %v1123
  %v2132 = vpack.c.b16 %v1132, %v1124
  %v2133 = vpack.c.b16 %v1141, %v1133
  %v2134 = vpack.c.b16 %v1142, %v1134
  %v2135 = vpack.c.b16 %v1143, %v1135
  %v2136 = vpack.c.b16 %v1144, %v1136
  %v2137 = vpack.c.b16 %v1145, %v1137
  %v2138 = vpack.c.b16 %v1146, %v1138
  %v2139 = vpack.c.b16 %v1147, %v1139
  %v2140 = vpack.c.b16 %v1148, %v1140
  %v2141 = vpack.c.b16 %v1157, %v1149
  %v2142 = vpack.c.b16 %v1158, %v1150
  %v2143 = vpack.c.b16 %v1159, %v1151
  %v2144 = vpack.c.b16 %v1160, %v1152
  %v2145 = vpack.c.b16 %v1161, %v1153
  %v2146 = vpack.c.b16 %v1162, %v1154
  %v2147 = vpack.c.b16 %v1163, %v1155
  %v2148 = vpack.c.b16 %v1164, %v1156
  %v2149 = vpack.c.b16 %v1173, %v1165
  %v2150 = vpack.c.b16 %v1174, %v1166
  %v2151 = vpack.c.b16 %v1175, %v1167
  %v2152 = vpack.c.b16 %v1176, %v1168
  %v2153 = vpack.c.b16 %v1177, %v1169
  %v2154 = vpack.c.b16 %v1178, %v1170
  %v2155 = vpack.c.b16 %v1179, %v1171
  %v2156 = vpack.c.b16 %v1180, %v1172
  %v2157 = vpack.c.b16 %v1189, %v1181
  %v2158 = vpack.c.b16 %v1190, %v1182
  %v2159 = vpack.c.b16 %v1191, %v1183
  %v2160 = vpack.c.b16 %v1192, %v1184
  %v2161 = vpack.c.b16 %v1193, %v1185
  %v2162 = vpack.c.b16 %v1194, %v1186
  %v2163 = vpack.c.b16 %v1195, %v1187
  %v2164 = vpack.c.b16 %v1196, %v1188
  %v2165 = vpack.c.b16 %v1205, %v1197
  %v2166 = vpack.c.b16 %v1206, %v1198
  %v2167 = vpack.c.b16 %v1207, %v1199
  %v2168 = vpack.c.b16 %v1208, %v1200
  %v2169 = vpack.c.b16 %v1209, %v1201
  %v2170 = vpack.c.b16 %v1210, %v1202
  %v2171 = vpack.c.b16 %v1211, %v1203
  %v2172 = vpack.c.b16 %v1212, %v1204
  %v2173 = vpack.c.b16 %v1221, %v1213
  %v2174 = vpack.c.b16 %v1222, %v1214
  %v2175 = vpack.c.b16 %v1223, %v1215
  %v2176 = vpack.c.b16 %v1224, %v1216
  %v2177 = vpack.c.b16 %v1225, %v1217
  %v2178 = vpack.c.b16 %v1226, %v1218
  %v2179 = vpack.c.b16 %v1227, %v1219
  %v2180 = vpack.c.b16 %v1228, %v1220
  %v2181 = vpack.c.b16 %v1237, %v1229
  %v2182 = vpack.c.b16 %v1238, %v1230
  %v2183 = vpack.c.b16 %v1239, %v1231
  %v2184 = vpack.c.b16 %v1240, %v1232
  %v2185 = vpack.c.b16 %v1241, %v1233
  %v2186 = vpack.c.b16 %v1242, %v1234
  %v2187 = vpack.c.b16 %v1243, %v1235
  %v2188 = vpack.c.b16 %v1244, %v1236
  %v2189 = vpack.c.b16 %v1253, %v1245
  %v2190 = vpack.c.b16 %v1254, %v1246
  %v2191 = vpack.c.b16 %v1255, %v1247
  %v2192 = vpack.c.b16 %v1256, %v1248
  %v2193 = vpack.c.b16 %v1257, %v1249
  %v2194 = vpack.c.b16 %v1258, %v1250
  %v2195 = vpack.c.b16 %v1259, %v1251
  %v2196 = vpack.c.b16 %v1260, %v1252
  %v2197 = vpack.c.b16 %v1269, %v1261
  %v2198 = vpack.c.b16 %v1270, %v1262
  %v2199 = vpack.c.b16 %v1271, %v1263
  %v2200 = vpack.c.b16 %v1272, %v1264
  %v2201 = vpack.c.b16 %v1273, %v1265
  %v2202 = vpack.c.b16 %v1274, %v1266
  %v2203 = vpack.c.b16 %v1275, %v1267
  %v2204 = vpack.c.b16 %v1276, %v1268
  %v2205 = vpack.c.b16 %v1285, %v1277
  %v2206 = vpack.c.b16 %v1286, %v1278
  %v2207 = vpack.c.b16 %v1287, %v1279
  %v2208 = vpack.c.b16 %v1288, %v1280
  %v2209 = vpack.c.b16 %v1289, %v1281
  %v2210 = vpack.c.b16 %v1290, %v1282
  %v2211 = vpack.c.b16 %v1291, %v1283
  %v2212 = vpack.c.b16 %v1292, %v1284
  %v2213 = vpack.c.b16 %v1301, %v1293
  %v2214 = vpack.c.b16 %v1302, %v1294
  %v2215 = vpack.c.b16 %v1303, %v1295
  %v2216 = vpack.c.b16 %v1304, %v1296
  %v2217 = vpack.c.b16 %v1305, %v1297
  %v2218 = vpack.c.b16 %v1306, %v1298
  %v2219 = vpack.c.b16 %v1307, %v1299
  %v2220 = vpack.c.b16 %v1308, %v1300
  %v2221 = vpack.c.b16 %v1317, %v1309
  %v2222 = vpack.c.b16 %v1318, %v1310
  %v2223 = vpack.c.b16 %v1319, %v1311
  %v2224 = vpack.c.b16 %v1320, %v1312
  %v2225 = vpack.c.b16 %v1321, %v1313
  %v2226 = vpack.c.b16 %v1322, %v1314
  %v2227 = vpack.c.b16 %v1323, %v1315
  %v2228 = vpack.c.b16 %v1324, %v1316
  %v2229 = vpack.c.b16 %v1333, %v1325
  %v2230 = vpack.c.b16 %v1334, %v1326
  %v2231 = vpack.c.b16 %v1335, %v1327
  %v2232 = vpack.c.b16 %v1336, %v1328
  %v2233 = vpack.c.b16 %v1337, %v1329
  %v2234 = vpack.c.b16 %v1338, %v1330
  %v2235 = vpack.c.b16 %v1339, %v1331
  %v2236 = vpack.c.b16 %v1340, %v1332
  %v2237 = vpack.c.b16 %v1349, %v1341
  %v2238 = vpack.c.b16 %v1350, %v1342
  %v2239 = vpack.c.b16 %v1351, %v1343
  %v2240 = vpack.c.b16 %v1352, %v1344
  %v2241 = vpack.c.b16 %v1353, %v1345
  %v2242 = vpack.c.b16 %v1354, %v1346
  %v2243 = vpack.c.b16 %v1355, %v1347
  %v2244 = vpack.c.b16 %v1356, %v1348
  %v2245 = vpack.c.b16 %v1365, %v1357
  %v2246 = vpack.c.b16 %v1366, %v1358
  %v2247 = vpack.c.b16 %v1367, %v1359
  %v2248 = vpack.c.b16 %v1368, %v1360
  %v2249 = vpack.c.b16 %v1369, %v1361
  %v2250 = vpack.c.b16 %v1370, %v1362
  %v2251 = vpack.c.b16 %v1371, %v1363
  %v2252 = vpack.c.b16 %v1372, %v1364
  %v2253 = vpack.c.b16 %v1381, %v1373
  %v2254 = vpack.c.b16 %v1382, %v1374
  %v2255 = vpack.c.b16 %v1383, %v1375
  %v2256 = vpack.c.b16 %v1384, %v1376
  %v2257 = vpack.c.b16 %v1385, %v1377
  %v2258 = vpack.c.b16 %v1386, %v1378
  %v2259 = vpack.c.b16 %v1387, %v1379
  %v2260 = vpack.c.b16 %v1388, %v1380
  %v2261 = vpack.c.b16 %v1397, %v1389
  %v2262 = vpack.c.b16 %v1398, %v1390
  %v2263 = vpack.c.b16 %v1399, %v1391
  %v2264 = vpack.c.b16 %v1400, %v1392
  %v2265 = vpack.c.b16 %v1401, %v1393
  %v2266 = vpack.c.b16 %v1402, %v1394
  %v2267 = vpack.c.b16 %v1403, %v1395
  %v2268 = vpack.c.b16 %v1404, %v1396
  %v2269 = vpack.c.b16 %v1413, %v1405
  %v2270 = vpack.c.b16 %v1414, %v1406
  %v2271 = vpack.c.b16 %v1415, %v1407
  %v2272 = vpack.c.b16 %v1416, %v1408
  %v2273 = vpack.c.b16 %v1417, %v1409
  %v2274 = vpack.c.b16 %v1418, %v1410
  %v2275 = vpack.c.b16 %v1419, %v1411
  %v2276 = vpack.c.b16 %v1420, %v1412
  %v2277 = vpack.c.b16 %v1429, %v1421
  %v2278 = vpack.c.b16 %v1430, %v1422
  %v2279 = vpack.c.b16 %v1431, %v1423
  %v2280 = vpack.c.b16 %v1432, %v1424
  %v2281 = vpack.c.b16 %v1433, %v1425
  %v2282 = vpack.c.b16 %v1434, %v1426
  %v2283 = vpack.c.b16 %v1435, %v1427
  %v2284 = vpack.c.b16 %v1436, %v1428
  %v2285 = vpack.c.b16 %v1445, %v1437
  %v2286 = vpack.c.b16 %v1446, %v1438
  %v2287 = vpack.c.b16 %v1447, %v1439
  %v2288 = vpack.c.b16 %v1448, %v1440
  %v2289 = vpack.c.b16 %v1449, %v1441
  %v2290 = vpack.c.b16 %v1450, %v1442
  %v2291 = vpack.c.b16 %v1451, %v1443
  %v2292 = vpack.c.b16 %v1452, %v1444
  %v2293 = vpack.c.b16 %v1461, %v1453
  %v2294 = vpack.c.b16 %v1462, %v1454
  %v2295 = vpack.c.b16 %v1463, %v1455
  %v2296 = vpack.c.b16 %v1464, %v1456
  %v2297 = vpack.c.b16 %v1465, %v1457
  %v2298 = vpack.c.b16 %v1466, %v1458
  %v2299 = vpack.c.b16 %v1467, %v1459
  %v2300 = vpack.c.b16 %v1468, %v1460
  %v2301 = vpack.c.b16 %v1477, %v1469
  %v2302 = vpack.c.b16 %v1478, %v1470
  %v2303 = vpack.c.b16 %v1479, %v1471
  %v2304 = vpack.c.b16 %v1480, %v1472
  %v2305 = vpack.c.b16 %v1481, %v1473
  %v2306 = vpack.c.b16 %v1482, %v1474
  %v2307 = vpack.c.b16 %v1483, %v1475
  %v2308 = vpack.c.b16 %v1484, %v1476
  %v2309 = vpack.c.b16 %v1493, %v1485
  %v2310 = vpack.c.b16 %v1494, %v1486
  %v2311 = vpack.c.b16 %v1495, %v1487
  %v2312 = vpack.c.b16 %v1496, %v1488
  %v2313 = vpack.c.b16 %v1497, %v1489
  %v2314 = vpack.c.b16 %v1498, %v1490
  %v2315 = vpack.c.b16 %v1499, %v1491
  %v2316 = vpack.c.b16 %v1500, %v1492
  %v2317 = vpack.c.b16 %v1509, %v1501
  %v2318 = vpack.c.b16 %v1510, %v1502
  %v2319 = vpack.c.b16 %v1511, %v1503
  %v2320 = vpack.c.b16 %v1512, %v1504
  %v2321 = vpack.c.b16 %v1513, %v1505
  %v2322 = vpack.c.b16 %v1514, %v1506
  %v2323 = vpack.c.b16 %v1515, %v1507
  %v2324 = vpack.c.b16 %v1516, %v1508
  %v2325 = vpack.c.b16 %v1525, %v1517
  %v2326 = vpack.c.b16 %v1526, %v1518
  %v2327 = vpack.c.b16 %v1527, %v1519
  %v2328 = vpack.c.b16 %v1528, %v1520
  %v2329 = vpack.c.b16 %v1529, %v1521
  %v2330 = vpack.c.b16 %v1530, %v1522
  %v2331 = vpack.c.b16 %v1531, %v1523
  %v2332 = vpack.c.b16 %v1532, %v1524
  %v2333 = vpack.c.b16 %v1541, %v1533
  %v2334 = vpack.c.b16 %v1542, %v1534
  %v2335 = vpack.c.b16 %v1543, %v1535
  %v2336 = vpack.c.b16 %v1544, %v1536
  %v2337 = vpack.c.b16 %v1545, %v1537
  %v2338 = vpack.c.b16 %v1546, %v1538
  %v2339 = vpack.c.b16 %v1547, %v1539
  %v2340 = vpack.c.b16 %v1548, %v1540
  %v2341 = vpack.c.b16 %v1557, %v1549
  %v2342 = vpack.c.b16 %v1558, %v1550
  %v2343 = vpack.c.b16 %v1559, %v1551
  %v2344 = vpack.c.b16 %v1560, %v1552
  %v2345 = vpack.c.b16 %v1561, %v1553
  %v2346 = vpack.c.b16 %v1562, %v1554
  %v2347 = vpack.c.b16 %v1563, %v1555
  %v2348 = vpack.c.b16 %v1564, %v1556
  %v2349 = vpack.c.b16 %v1573, %v1565
  %v2350 = vpack.c.b16 %v1574, %v1566
  %v2351 = vpack.c.b16 %v1575, %v1567
  %v2352 = vpack.c.b16 %v1576, %v1568
  %v2353 = vpack.c.b16 %v1577, %v1569
  %v2354 = vpack.c.b16 %v1578, %v1570
  %v2355 = vpack.c.b16 %v1579, %v1571
  %v2356 = vpack.c.b16 %v1580, %v1572
  %v2357 = vpack.c.b16 %v1589, %v1581
  %v2358 = vpack.c.b16 %v1590, %v1582
  %v2359 = vpack.c.b16 %v1591, %v1583
  %v2360 = vpack.c.b16 %v1592, %v1584
  %v2361 = vpack.c.b16 %v1593, %v1585
  %v2362 = vpack.c.b16 %v1594, %v1586
  %v2363 = vpack.c.b16 %v1595, %v1587
  %v2364 = vpack.c.b16 %v1596, %v1588
  %v2365 = vpack.c.b16 %v1605, %v1597
  %v2366 = vpack.c.b16 %v1606, %v1598
  %v2367 = vpack.c.b16 %v1607, %v1599
  %v2368 = vpack.c.b16 %v1608, %v1600
  %v2369 = vpack.c.b16 %v1609, %v1601
  %v2370 = vpack.c.b16 %v1610, %v1602
  %v2371 = vpack.c.b16 %v1611, %v1603
  %v2372 = vpack.c.b16 %v1612, %v1604
  %v2373 = vpack.c.b16 %v1621, %v1613
  %v2374 = vpack.c.b16 %v1622, %v1614
  %v2375 = vpack.c.b16 %v1623, %v1615
  %v2376 = vpack.c.b16 %v1624, %v1616
  %v2377 = vpack.c.b16 %v1625, %v1617
  %v2378 = vpack.c.b16 %v1626, %v1618
  %v2379 = vpack.c.b16 %v1627, %v1619
  %v2380 = vpack.c.b16 %v1628, %v1620
  %v2381 = vpack.c.b16 %v1637, %v1629
  %v2382 = vpack.c.b16 %v1638, %v1630
  %v2383 = vpack.c.b16 %v1639, %v1631
  %v2384 = vpack.c.b16 %v1640, %v1632
  %v2385 = vpack.c.b16 %v1641, %v1633
  %v2386 = vpack.c.b16 %v1642, %v1634
  %v2387 = vpack.c.b16 %v1643, %v1635
  %v2388 = vpack.c.b16 %v1644, %v1636
  %v2389 = vpack.c.b16 %v1653, %v1645
  %v2390 = vpack.c.b16 %v1654, %v1646
  %v2391 = vpack.c.b16 %v1655, %v1647
  %v2392 = vpack.c.b16 %v1656, %v1648
  %v2393 = vpack.c.b16 %v1657, %v1649
  %v2394 = vpack.c.b16 %v1658, %v1650
  %v2395 = vpack.c.b16 %v1659, %v1651
  %v2396 = vpack.c.b16 %v1660, %v1652
  %v2397 = vpack.c.b16 %v1669, %v1661
  %v2398 = vpack.c.b16 %v1670, %v1662
  %v2399 = vpack.c.b16 %v1671, %v1663
  %v2400 = vpack.c.b16 %v1672, %v1664
  %v2401 = vpack.c.b16 %v1673, %v1665
  %v2402 = vpack.c.b16 %v1674, %v1666
  %v2403 = vpack.c.b16 %v1675, %v1667
  %v2404 = vpack.c.b16 %v1676, %v1668
  %v2405 = vpack.c.b16 %v1685, %v1677
  %v2406 = vpack.c.b16 %v1686, %v1678
  %v2407 = vpack.c.b16 %v1687, %v1679
  %v2408 = vpack.c.b16 %v1688, %v1680
  %v2409 = vpack.c.b16 %v1689, %v1681
  %v2410 = vpack.c.b16 %v1690, %v1682
  %v2411 = vpack.c.b16 %v1691, %v1683
  %v2412 = vpack.c.b16 %v1692, %v1684
  %v2413 = vpack.c.b16 %v1701, %v1693
  %v2414 = vpack.c.b16 %v1702, %v1694
  %v2415 = vpack.c.b16 %v1703, %v1695
  %v2416 = vpack.c.b16 %v1704, %v1696
  %v2417 = vpack.c.b16 %v1705, %v1697
  %v2418 = vpack.c.b16 %v1706, %v1698
  %v2419 = vpack.c.b16 %v1707, %v1699
  %v2420 = vpack.c.b16 %v1708, %v1700
  %v2421 = vpack.c.b16 %v1717, %v1709
  %v2422 = vpack.c.b16 %v1718, %v1710
  %v2423 = vpack.c.b16 %v1719, %v1711
  %v2424 = vpack.c.b16 %v1720, %v1712
  %v2425 = vpack.c.b16 %v1721, %v1713
  %v2426 = vpack.c.b16 %v1722, %v1714
  %v2427 = vpack.c.b16 %v1723, %v1715
  %v2428 = vpack.c.b16 %v1724, %v1716
  %v2429 = vpack.c.b16 %v1733, %v1725
  %v2430 = vpack.c.b16 %v1734, %v1726
  %v2431 = vpack.c.b16 %v1735, %v1727
  %v2432 = vpack.c.b16 %v1736, %v1728
  %v2433 = vpack.c.b16 %v1737, %v1729
  %v2434 = vpack.c.b16 %v1738, %v1730
  %v2435 = vpack.c.b16 %v1739, %v1731
  %v2436 = vpack.c.b16 %v1740, %v1732
  %v2437 = vpack.c.b16 %v1749, %v1741
  %v2438 = vpack.c.b16 %v1750, %v1742
  %v2439 = vpack.c.b16 %v1751, %v1743
  %v2440 = vpack.c.b16 %v1752, %v1744
  %v2441 = vpack.c.b16 %v1753, %v1745
  %v2442 = vpack.c.b16 %v1754, %v1746
  %v2443 = vpack.c.b16 %v1755, %v1747
  %v2444 = vpack.c.b16 %v1756, %v1748
  %v2445 = vpack.c.b16 %v1765, %v1757
  %v2446 = vpack.c.b16 %v1766, %v1758
  %v2447 = vpack.c.b16 %v1767, %v1759
  %v2448 = vpack.c.b16 %v1768, %v1760
  %v2449 = vpack.c.b16 %v1769, %v1761
  %v2450 = vpack.c.b16 %v1770, %v1762
  %v2451 = vpack.c.b16 %v1771, %v1763
  %v2452 = vpack.c.b16 %v1772, %v1764
  %v2453 = vpack.c.b16 %v1781, %v1773
  %v2454 = vpack.c.b16 %v1782, %v1774
  %v2455 = vpack.c.b16 %v1783, %v1775
  %v2456 = vpack.c.b16 %v1784, %v1776
  %v2457 = vpack.c.b16 %v1785, %v1777
  %v2458 = vpack.c.b16 %v1786, %v1778
  %v2459 = vpack.c.b16 %v1787, %v1779
  %v2460 = vpack.c.b16 %v1788, %v1780
  %v2461 = vpack.c.b16 %v1797, %v1789
  %v2462 = vpack.c.b16 %v1798, %v1790
  %v2463 = vpack.c.b16 %v1799, %v1791
  %v2464 = vpack.c.b16 %v1800, %v1792
  %v2465 = vpack.c.b16 %v1801, %v1793
  %v2466 = vpack.c.b16 %v1802, %v1794
  %v2467 = vpack.c.b16 %v1803, %v1795
  %v2468 = vpack.c.b16 %v1804, %v1796
  %v2469 = vpack.c.b16 %v1813, %v1805
  %v2470 = vpack.c.b16 %v1814, %v1806
  %v2471 = vpack.c.b16 %v1815, %v1807
  %v2472 = vpack.c.b16 %v1816, %v1808
  %v2473 = vpack.c.b16 %v1817, %v1809
  %v2474 = vpack.c.b16 %v1818, %v1810
  %v2475 = vpack.c.b16 %v1819, %v1811
  %v2476 = vpack.c.b16 %v1820, %v1812
  %v2477 = vpack.c.b16 %v1829, %v1821
  %v2478 = vpack.c.b16 %v1830, %v1822
  %v2479 = vpack.c.b16 %v1831, %v1823
  %v2480 = vpack.c.b16 %v1832, %v1824
  %v2481 = vpack.c.b16 %v1833, %v1825
  %v2482 = vpack.c.b16 %v1834, %v1826
  %v2483 = vpack.c.b16 %v1835, %v1827
  %v2484 = vpack.c.b16 %v1836, %v1828
  %v2485 = vpack.c.b16 %v1845, %v1837
  %v2486 = vpack.c.b16 %v1846, %v1838
  %v2487 = vpack.c.b16 %v1847, %v1839
  %v2488 = vpack.c.b16 %v1848, %v1840
  %v2489 = vpack.c.b16 %v1849, %v1841
  %v2490 = vpack.c.b16 %v1850, %v1842
  %v2491 = vpack.c.b16 %v1851, %v1843
  %v2492 = vpack.c.b16 %v1852, %v1844
  %v2493 = vpack.c.b16 %v1861, %v1853
  %v2494 = vpack.c.b16 %v1862, %v1854
  %v2495 = vpack.c.b16 %v1863, %v1855
  %v2496 = vpack.c.b16 %v1864, %v1856
  %v2497 = vpack.c.b16 %v1865, %v1857
  %v2498 = vpack.c.b16 %v1866, %v1858
  %v2499 = vpack.c.b16 %v1867, %v1859
  %v2500 = vpack.c.b16 %v1868, %v1860
  %v2501 = vpack.c.b16 %v1877, %v1869
  %v2502 = vpack.c.b16 %v1878, %v1870
  %v2503 = vpack.c.b16 %v1879, %v1871
  %v2504 = vpack.c.b16 %v1880, %v1872
  %v2505 = vpack.c.b16 %v1881, %v1873
  %v2506 = vpack.c.b16 %v1882, %v1874
  %v2507 = vpack.c.b16 %v1883, %v1875
  %v2508 = vpack.c.b16 %v1884, %v1876
  %v2509 = vpack.c.b16 %v1893, %v1885
  %v2510 = vpack.c.b16 %v1894, %v1886
  %v2511 = vpack.c.b16 %v1895, %v1887
  %v2512 = vpack.c.b16 %v1896, %v1888
  %v2513 = vpack.c.b16 %v1897, %v1889
  %v2514 = vpack.c.b16 %v1898, %v1890
  %v2515 = vpack.c.b16 %v1899, %v1891
  %v2516 = vpack.c.b16 %v1900, %v1892
  %v2517 = vpack.c.b16 %v1909, %v1901
  %v2518 = vpack.c.b16 %v1910, %v1902
  %v2519 = vpack.c.b16 %v1911, %v1903
  %v2520 = vpack.c.b16 %v1912, %v1904
  %v2521 = vpack.c.b16 %v1913, %v1905
  %v2522 = vpack.c.b16 %v1914, %v1906
  %v2523 = vpack.c.b16 %v1915, %v1907
  %v2524 = vpack.c.b16 %v1916, %v1908
  %v2525 = vpack.c.b16 %v1925, %v1917
  %v2526 = vpack.c.b16 %v1926, %v1918
  %v2527 = vpack.c.b16 %v1927, %v1919
  %v2528 = vpack.c.b16 %v1928, %v1920
  %v2529 = vpack.c.b16 %v1929, %v1921
  %v2530 = vpack.c.b16 %v1930, %v1922
  %v2531 = vpack.c.b16 %v1931, %v1923
  %v2532 = vpack.c.b16 %v1932, %v1924
  %v2533 = vpack.c.b16 %v1941, %v1933
  %v2534 = vpack.c.b16 %v1942, %v1934
  %v2535 = vpack.c.b16 %v1943, %v1935
  %v2536 = vpack.c.b16 %v1944, %v1936
  %v2537 = vpack.c.b16 %v1945, %v1937
  %v2538 = vpack.c.b16 %v1946, %v1938
  %v2539 = vpack.c.b16 %v1947, %v1939
  %v2540 = vpack.c.b16 %v1948, %v1940
  %v2541 = vpack.c.b16 %v1957, %v1949
  %v2542 = vpack.c.b16 %v1958, %v1950
  %v2543 = vpack.c.b16 %v1959, %v1951
  %v2544 = vpack.c.b16 %v1960, %v1952
  %v2545 = vpack.c.b16 %v1961, %v1953
  %v2546 = vpack.c.b16 %v1962, %v1954
  %v2547 = vpack.c.b16 %v1963, %v1955
  %v2548 = vpack.c.b16 %v1964, %v1956
  %v2549 = vpack.c.b16 %v1973, %v1965
  %v2550 = vpack.c.b16 %v1974, %v1966
  %v2551 = vpack.c.b16 %v1975, %v1967
  %v2552 = vpack.c.b16 %v1976, %v1968
  %v2553 = vpack.c.b16 %v1977, %v1969
  %v2554 = vpack.c.b16 %v1978, %v1970
  %v2555 = vpack.c.b16 %v1979, %v1971
  %v2556 = vpack.c.b16 %v1980, %v1972
  %v2557 = vpack.c.b16 %v1989, %v1981
  %v2558 = vpack.c.b16 %v1990, %v1982
  %v2559 = vpack.c.b16 %v1991, %v1983
  %v2560 = vpack.c.b16 %v1992, %v1984
  %v2561 = vpack.c.b16 %v1993, %v1985
  %v2562 = vpack.c.b16 %v1994, %v1986
  %v2563 = vpack.c.b16 %v1995, %v1987
  %v2564 = vpack.c.b16 %v1996, %v1988
  %v2565 = vpack.c.b16 %v2005, %v1997
  %v2566 = vpack.c.b16 %v2006, %v1998
  %v2567 = vpack.c.b16 %v2007, %v1999
  %v2568 = vpack.c.b16 %v2008, %v2000
  %v2569 = vpack.c.b16 %v2009, %v2001
  %v2570 = vpack.c.b16 %v2010, %v2002
  %v2571 = vpack.c.b16 %v2011, %v2003
  %v2572 = vpack.c.b16 %v2012, %v2004
  %v2573 = vpack.c.b16 %v2021, %v2013
  %v2574 = vpack.c.b16 %v2022, %v2014
  %v2575 = vpack.c.b16 %v2023, %v2015
  %v2576 = vpack.c.b16 %v2024, %v2016
  %v2577 = vpack.c.b16 %v2025, %v2017
  %v2578 = vpack.c.b16 %v2026, %v2018
  %v2579 = vpack.c.b16 %v2027, %v2019
  %v2580 = vpack.c.b16 %v2028, %v2020
  %v2581 = vpack.c.b16 %v2037, %v2029
  %v2582 = vpack.c.b16 %v2038, %v2030
  %v2583 = vpack.c.b16 %v2039, %v2031
  %v2584 = vpack.c.b16 %v2040, %v2032
  %v2585 = vpack.c.b16 %v2041, %v2033
  %v2586 = vpack.c.b16 %v2042, %v2034
  %v2587 = vpack.c.b16 %v2043, %v2035
  %v2588 = vpack.c.b16 %v2044, %v2036
  %v2589 = vpack.c.b16 %v2053, %v2045
  %v2590 = vpack.c.b16 %v2054, %v2046
  %v2591 = vpack.c.b16 %v2055, %v2047
  %v2592 = vpack.c.b16 %v2056, %v2048
  %v2593 = vpack.c.b16 %v2057, %v2049
  %v2594 = vpack.c.b16 %v2058, %v2050
  %v2595 = vpack.c.b16 %v2059, %v2051
  %v2596 = vpack.c.b16 %v2060, %v2052
  %v2597 = vpack.c.b16 %v2069, %v2061
  %v2598 = vpack.c.b16 %v2070, %v2062
  %v2599 = vpack.c.b16 %v2071, %v2063
  %v2600 = vpack.c.b16 %v2072, %v2064
  %v2601 = vpack.c.b16 %v2073, %v2065
  %v2602 = vpack.c.b16 %v2074, %v2066
  %v2603 = vpack.c.b16 %v2075, %v2067
  %v2604 = vpack.c.b16 %v2076, %v2068
  %v2605 = vpack.c.b16 %v2085, %v2077
  %v2606 = vpack.c.b16 %v2086, %v2078
  %v2607 = vpack.c.b16 %v2087, %v2079
  %v2608 = vpack.c.b16 %v2088, %v2080
  %v2609 = vpack.c.b16 %v2089, %v2081
  %v2610 = vpack.c.b16 %v2090, %v2082
  %v2611 = vpack.c.b16 %v2091, %v2083
  %v2612 = vpack.c.b16 %v2092, %v2084
  %v2613 = vpack.c.b16 %v2101, %v2093
  %v2614 = vpack.c.b16 %v2102, %v2094
  %v2615 = vpack.c.b16 %v2103, %v2095
  %v2616 = vpack.c.b16 %v2104, %v2096
  %v2617 = vpack.c.b16 %v2105, %v2097
  %v2618 = vpack.c.b16 %v2106, %v2098
  %v2619 = vpack.c.b16 %v2107, %v2099
  %v2620 = vpack.c.b16 %v2108, %v2100
  %3133 = vmatprep.subr.bf16.mxu0 %v2166
  %3134 = vmatpush1.bf16.msra.mxu0 %v2165
  %3135 = vmatprep.subr.bf16.mxu0 %v2158
  %3136 = vmatpush1.bf16.msra.mxu0 %v2157
  %3137 = vmatprep.subr.bf16.mxu0 %v2150
  %3138 = vmatpush1.bf16.msra.mxu0 %v2149
  %3139 = vmatprep.subr.bf16.mxu0 %v2142
  %3140 = vmatpush1.bf16.msra.mxu0 %v2141
  %3141 = vmatprep.subr.bf16.mxu0 %v2134
  %3142 = vmatpush1.bf16.msra.mxu0 %v2133
  %3143 = vmatprep.subr.bf16.mxu0 %v2126
  %3144 = vmatpush1.bf16.msra.mxu0 %v2125
  %3145 = vmatprep.subr.bf16.mxu0 %v2118
  %3146 = vmatpush1.bf16.msra.mxu0 %v2117
  %3147 = vmatprep.subr.bf16.mxu0 %v2110
  %3148 = vmatpush1.bf16.msra.mxu0 %v2109
  %3149 = vmatprep.subr.bf16.mxu0 %v2230
  %3150 = vmatpush2.bf16.msra.mxu0 %v2229
  %3151 = vmatprep.subr.bf16.mxu0 %v2222
  %3152 = vmatpush2.bf16.msra.mxu0 %v2221
  %3153 = vmatprep.subr.bf16.mxu0 %v2214
  %3154 = vmatpush2.bf16.msra.mxu0 %v2213
  %3155 = vmatprep.subr.bf16.mxu0 %v2206
  %3156 = vmatpush2.bf16.msra.mxu0 %v2205
  %3157 = vmatprep.subr.bf16.mxu0 %v2198
  %3158 = vmatpush2.bf16.msra.mxu0 %v2197
  %3159 = vmatprep.subr.bf16.mxu0 %v2190
  %3160 = vmatpush2.bf16.msra.mxu0 %v2189
  %3161 = vmatprep.subr.bf16.mxu0 %v2182
  %3162 = vmatpush2.bf16.msra.mxu0 %v2181
  %3163 = vmatprep.subr.bf16.mxu0 %v2174
  %3164 = vmatpush2.bf16.msra.mxu0 %v2173
  %3165 = vmatprep.mubr.bf16.mxu0 %v558
  %3166 = vmatmul.mubr.bf16.gmra.mxu0 %v557
  %v3167 = vpop.f32.mrf.mxu0
  %v3168 = vadd.f32 %v543, %v3167
  %v3169 = vpop.f32.mrf.mxu0
  %v3170 = vadd.f32 %v543, %v3169
  %v3171 = vpop.f32.mrf.mxu0
  %v3172 = vpop.f32.mrf.mxu0
  %3173 = vdwg.mxu0
  %3174 = vmatprep.subr.bf16.mxu0 %v2294
  %3175 = vmatpush1.bf16.msra.mxu0 %v2293
  %3176 = vmatprep.subr.bf16.mxu0 %v2286
  %3177 = vmatpush1.bf16.msra.mxu0 %v2285
  %3178 = vmatprep.subr.bf16.mxu0 %v2278
  %3179 = vmatpush1.bf16.msra.mxu0 %v2277
  %3180 = vmatprep.subr.bf16.mxu0 %v2270
  %3181 = vmatpush1.bf16.msra.mxu0 %v2269
  %3182 = vmatprep.subr.bf16.mxu0 %v2262
  %3183 = vmatpush1.bf16.msra.mxu0 %v2261
  %3184 = vmatprep.subr.bf16.mxu0 %v2254
  %3185 = vmatpush1.bf16.msra.mxu0 %v2253
  %3186 = vmatprep.subr.bf16.mxu0 %v2246
  %3187 = vmatpush1.bf16.msra.mxu0 %v2245
  %3188 = vmatprep.subr.bf16.mxu0 %v2238
  %3189 = vmatpush1.bf16.msra.mxu0 %v2237
  %3190 = vmatprep.subr.bf16.mxu0 %v2358
  %3191 = vmatpush2.bf16.msra.mxu0 %v2357
  %3192 = vmatprep.subr.bf16.mxu0 %v2350
  %3193 = vmatpush2.bf16.msra.mxu0 %v2349
  %3194 = vmatprep.subr.bf16.mxu0 %v2342
  %3195 = vmatpush2.bf16.msra.mxu0 %v2341
  %3196 = vmatprep.subr.bf16.mxu0 %v2334
  %3197 = vmatpush2.bf16.msra.mxu0 %v2333
  %3198 = vmatprep.subr.bf16.mxu0 %v2326
  %3199 = vmatpush2.bf16.msra.mxu0 %v2325
  %3200 = vmatprep.subr.bf16.mxu0 %v2318
  %3201 = vmatpush2.bf16.msra.mxu0 %v2317
  %3202 = vmatprep.subr.bf16.mxu0 %v2310
  %3203 = vmatpush2.bf16.msra.mxu0 %v2309
  %3204 = vmatprep.subr.bf16.mxu0 %v2302
  %3205 = vmatpush2.bf16.msra.mxu0 %v2301
  %3206 = vmatprep.mubr.bf16.mxu0 %v560
  %3207 = vmatmul.mubr.bf16.gmra.mxu0 %v559
  %v3208 = vpop.f32.mrf.mxu0
  %v3209 = vadd.f32 %v3168, %v3208
  %v3210 = vpop.f32.mrf.mxu0
  %v3211 = vadd.f32 %v3170, %v3210
  %v3212 = vpop.f32.mrf.mxu0
  %v3213 = vpop.f32.mrf.mxu0
  %3214 = vdwg.mxu0
  %3215 = vmatprep.subr.bf16.mxu0 %v2422
  %3216 = vmatpush1.bf16.msra.mxu0 %v2421
  %3217 = vmatprep.subr.bf16.mxu0 %v2414
  %3218 = vmatpush1.bf16.msra.mxu0 %v2413
  %3219 = vmatprep.subr.bf16.mxu0 %v2406
  %3220 = vmatpush1.bf16.msra.mxu0 %v2405
  %3221 = vmatprep.subr.bf16.mxu0 %v2398
  %3222 = vmatpush1.bf16.msra.mxu0 %v2397
  %3223 = vmatprep.subr.bf16.mxu0 %v2390
  %3224 = vmatpush1.bf16.msra.mxu0 %v2389
  %3225 = vmatprep.subr.bf16.mxu0 %v2382
  %3226 = vmatpush1.bf16.msra.mxu0 %v2381
  %3227 = vmatprep.subr.bf16.mxu0 %v2374
  %3228 = vmatpush1.bf16.msra.mxu0 %v2373
  %3229 = vmatprep.subr.bf16.mxu0 %v2366
  %3230 = vmatpush1.bf16.msra.mxu0 %v2365
  %3231 = vmatprep.subr.bf16.mxu0 %v2486
  %3232 = vmatpush2.bf16.msra.mxu0 %v2485
  %3233 = vmatprep.subr.bf16.mxu0 %v2478
  %3234 = vmatpush2.bf16.msra.mxu0 %v2477
  %3235 = vmatprep.subr.bf16.mxu0 %v2470
  %3236 = vmatpush2.bf16.msra.mxu0 %v2469
  %3237 = vmatprep.subr.bf16.mxu0 %v2462
  %3238 = vmatpush2.bf16.msra.mxu0 %v2461
  %3239 = vmatprep.subr.bf16.mxu0 %v2454
  %3240 = vmatpush2.bf16.msra.mxu0 %v2453
  %3241 = vmatprep.subr.bf16.mxu0 %v2446
  %3242 = vmatpush2.bf16.msra.mxu0 %v2445
  %3243 = vmatprep.subr.bf16.mxu0 %v2438
  %3244 = vmatpush2.bf16.msra.mxu0 %v2437
  %3245 = vmatprep.subr.bf16.mxu0 %v2430
  %3246 = vmatpush2.bf16.msra.mxu0 %v2429
  %3247 = vmatprep.mubr.bf16.mxu0 %v562
  %3248 = vmatmul.mubr.bf16.gmra.mxu0 %v561
  %v3249 = vpop.f32.mrf.mxu0
  %v3250 = vadd.f32 %v3209, %v3249
  %v3251 = vpop.f32.mrf.mxu0
  %v3252 = vadd.f32 %v3211, %v3251
  %v3253 = vpop.f32.mrf.mxu0
  %v3254 = vpop.f32.mrf.mxu0
  %3255 = vdwg.mxu0
  %3256 = vmatprep.subr.bf16.mxu0 %v2550
  %3257 = vmatpush1.bf16.msra.mxu0 %v2549
  %3258 = vmatprep.subr.bf16.mxu0 %v2542
  %3259 = vmatpush1.bf16.msra.mxu0 %v2541
  %3260 = vmatprep.subr.bf16.mxu0 %v2534
  %3261 = vmatpush1.bf16.msra.mxu0 %v2533
  %3262 = vmatprep.subr.bf16.mxu0 %v2526
  %3263 = vmatpush1.bf16.msra.mxu0 %v2525
  %3264 = vmatprep.subr.bf16.mxu0 %v2518
  %3265 = vmatpush1.bf16.msra.mxu0 %v2517
  %3266 = vmatprep.subr.bf16.mxu0 %v2510
  %3267 = vmatpush1.bf16.msra.mxu0 %v2509
  %3268 = vmatprep.subr.bf16.mxu0 %v2502
  %3269 = vmatpush1.bf16.msra.mxu0 %v2501
  %3270 = vmatprep.subr.bf16.mxu0 %v2494
  %3271 = vmatpush1.bf16.msra.mxu0 %v2493
  %3272 = vmatprep.subr.bf16.mxu0 %v2614
  %3273 = vmatpush2.bf16.msra.mxu0 %v2613
  %3274 = vmatprep.subr.bf16.mxu0 %v2606
  %3275 = vmatpush2.bf16.msra.mxu0 %v2605
  %3276 = vmatprep.subr.bf16.mxu0 %v2598
  %3277 = vmatpush2.bf16.msra.mxu0 %v2597
  %3278 = vmatprep.subr.bf16.mxu0 %v2590
  %3279 = vmatpush2.bf16.msra.mxu0 %v2589
  %3280 = vmatprep.subr.bf16.mxu0 %v2582
  %3281 = vmatpush2.bf16.msra.mxu0 %v2581
  %3282 = vmatprep.subr.bf16.mxu0 %v2574
  %3283 = vmatpush2.bf16.msra.mxu0 %v2573
  %3284 = vmatprep.subr.bf16.mxu0 %v2566
  %3285 = vmatpush2.bf16.msra.mxu0 %v2565
  %3286 = vmatprep.subr.bf16.mxu0 %v2558
  %3287 = vmatpush2.bf16.msra.mxu0 %v2557
  %3288 = vmatprep.mubr.bf16.mxu0 %v564
  %3289 = vmatmul.mubr.bf16.gmra.mxu0 %v563
  %v3290 = vpop.f32.mrf.mxu0
  %v3291 = vadd.f32 %v3250, %v3290
  %v3292 = vpop.f32.mrf.mxu0
  %v3293 = vadd.f32 %v3252, %v3292
  %v3294 = vpop.f32.mrf.mxu0
  %v3295 = vpop.f32.mrf.mxu0
  %3296 = vdwg.mxu0
  %3297 = vmatprep.subr.bf16.mxu0 %v2168
  %3298 = vmatpush1.bf16.msra.mxu0 %v2167
  %3299 = vmatprep.subr.bf16.mxu0 %v2160
  %3300 = vmatpush1.bf16.msra.mxu0 %v2159
  %3301 = vmatprep.subr.bf16.mxu0 %v2152
  %3302 = vmatpush1.bf16.msra.mxu0 %v2151
  %3303 = vmatprep.subr.bf16.mxu0 %v2144
  %3304 = vmatpush1.bf16.msra.mxu0 %v2143
  %3305 = vmatprep.subr.bf16.mxu0 %v2136
  %3306 = vmatpush1.bf16.msra.mxu0 %v2135
  %3307 = vmatprep.subr.bf16.mxu0 %v2128
  %3308 = vmatpush1.bf16.msra.mxu0 %v2127
  %3309 = vmatprep.subr.bf16.mxu0 %v2120
  %3310 = vmatpush1.bf16.msra.mxu0 %v2119
  %3311 = vmatprep.subr.bf16.mxu0 %v2112
  %3312 = vmatpush1.bf16.msra.mxu0 %v2111
  %3313 = vmatprep.subr.bf16.mxu0 %v2232
  %3314 = vmatpush2.bf16.msra.mxu0 %v2231
  %3315 = vmatprep.subr.bf16.mxu0 %v2224
  %3316 = vmatpush2.bf16.msra.mxu0 %v2223
  %3317 = vmatprep.subr.bf16.mxu0 %v2216
  %3318 = vmatpush2.bf16.msra.mxu0 %v2215
  %3319 = vmatprep.subr.bf16.mxu0 %v2208
  %3320 = vmatpush2.bf16.msra.mxu0 %v2207
  %3321 = vmatprep.subr.bf16.mxu0 %v2200
  %3322 = vmatpush2.bf16.msra.mxu0 %v2199
  %3323 = vmatprep.subr.bf16.mxu0 %v2192
  %3324 = vmatpush2.bf16.msra.mxu0 %v2191
  %3325 = vmatprep.subr.bf16.mxu0 %v2184
  %3326 = vmatpush2.bf16.msra.mxu0 %v2183
  %3327 = vmatprep.subr.bf16.mxu0 %v2176
  %3328 = vmatpush2.bf16.msra.mxu0 %v2175
  %3329 = vmatprep.mubr.bf16.mxu0 %v558
  %3330 = vmatmul.mubr.bf16.gmra.mxu0 %v557
  %v3331 = vpop.f32.mrf.mxu0
  %v3332 = vadd.f32 %v543, %v3331
  %v3333 = vpop.f32.mrf.mxu0
  %v3334 = vadd.f32 %v543, %v3333
  %v3335 = vpop.f32.mrf.mxu0
  %v3336 = vpop.f32.mrf.mxu0
  %3337 = vdwg.mxu0
  %3338 = vmatprep.subr.bf16.mxu0 %v2296
  %3339 = vmatpush1.bf16.msra.mxu0 %v2295
  %3340 = vmatprep.subr.bf16.mxu0 %v2288
  %3341 = vmatpush1.bf16.msra.mxu0 %v2287
  %3342 = vmatprep.subr.bf16.mxu0 %v2280
  %3343 = vmatpush1.bf16.msra.mxu0 %v2279
  %3344 = vmatprep.subr.bf16.mxu0 %v2272
  %3345 = vmatpush1.bf16.msra.mxu0 %v2271
  %3346 = vmatprep.subr.bf16.mxu0 %v2264
  %3347 = vmatpush1.bf16.msra.mxu0 %v2263
  %3348 = vmatprep.subr.bf16.mxu0 %v2256
  %3349 = vmatpush1.bf16.msra.mxu0 %v2255
  %3350 = vmatprep.subr.bf16.mxu0 %v2248
  %3351 = vmatpush1.bf16.msra.mxu0 %v2247
  %3352 = vmatprep.subr.bf16.mxu0 %v2240
  %3353 = vmatpush1.bf16.msra.mxu0 %v2239
  %3354 = vmatprep.subr.bf16.mxu0 %v2360
  %3355 = vmatpush2.bf16.msra.mxu0 %v2359
  %3356 = vmatprep.subr.bf16.mxu0 %v2352
  %3357 = vmatpush2.bf16.msra.mxu0 %v2351
  %3358 = vmatprep.subr.bf16.mxu0 %v2344
  %3359 = vmatpush2.bf16.msra.mxu0 %v2343
  %3360 = vmatprep.subr.bf16.mxu0 %v2336
  %3361 = vmatpush2.bf16.msra.mxu0 %v2335
  %3362 = vmatprep.subr.bf16.mxu0 %v2328
  %3363 = vmatpush2.bf16.msra.mxu0 %v2327
  %3364 = vmatprep.subr.bf16.mxu0 %v2320
  %3365 = vmatpush2.bf16.msra.mxu0 %v2319
  %3366 = vmatprep.subr.bf16.mxu0 %v2312
  %3367 = vmatpush2.bf16.msra.mxu0 %v2311
  %3368 = vmatprep.subr.bf16.mxu0 %v2304
  %3369 = vmatpush2.bf16.msra.mxu0 %v2303
  %3370 = vmatprep.mubr.bf16.mxu0 %v560
  %3371 = vmatmul.mubr.bf16.gmra.mxu0 %v559
  %v3372 = vpop.f32.mrf.mxu0
  %v3373 = vadd.f32 %v3332, %v3372
  %v3374 = vpop.f32.mrf.mxu0
  %v3375 = vadd.f32 %v3334, %v3374
  %v3376 = vpop.f32.mrf.mxu0
  %v3377 = vpop.f32.mrf.mxu0
  %3378 = vdwg.mxu0
  %3379 = vmatprep.subr.bf16.mxu0 %v2424
  %3380 = vmatpush1.bf16.msra.mxu0 %v2423
  %3381 = vmatprep.subr.bf16.mxu0 %v2416
  %3382 = vmatpush1.bf16.msra.mxu0 %v2415
  %3383 = vmatprep.subr.bf16.mxu0 %v2408
  %3384 = vmatpush1.bf16.msra.mxu0 %v2407
  %3385 = vmatprep.subr.bf16.mxu0 %v2400
  %3386 = vmatpush1.bf16.msra.mxu0 %v2399
  %3387 = vmatprep.subr.bf16.mxu0 %v2392
  %3388 = vmatpush1.bf16.msra.mxu0 %v2391
  %3389 = vmatprep.subr.bf16.mxu0 %v2384
  %3390 = vmatpush1.bf16.msra.mxu0 %v2383
  %3391 = vmatprep.subr.bf16.mxu0 %v2376
  %3392 = vmatpush1.bf16.msra.mxu0 %v2375
  %3393 = vmatprep.subr.bf16.mxu0 %v2368
  %3394 = vmatpush1.bf16.msra.mxu0 %v2367
  %3395 = vmatprep.subr.bf16.mxu0 %v2488
  %3396 = vmatpush2.bf16.msra.mxu0 %v2487
  %3397 = vmatprep.subr.bf16.mxu0 %v2480
  %3398 = vmatpush2.bf16.msra.mxu0 %v2479
  %3399 = vmatprep.subr.bf16.mxu0 %v2472
  %3400 = vmatpush2.bf16.msra.mxu0 %v2471
  %3401 = vmatprep.subr.bf16.mxu0 %v2464
  %3402 = vmatpush2.bf16.msra.mxu0 %v2463
  %3403 = vmatprep.subr.bf16.mxu0 %v2456
  %3404 = vmatpush2.bf16.msra.mxu0 %v2455
  %3405 = vmatprep.subr.bf16.mxu0 %v2448
  %3406 = vmatpush2.bf16.msra.mxu0 %v2447
  %3407 = vmatprep.subr.bf16.mxu0 %v2440
  %3408 = vmatpush2.bf16.msra.mxu0 %v2439
  %3409 = vmatprep.subr.bf16.mxu0 %v2432
  %3410 = vmatpush2.bf16.msra.mxu0 %v2431
  %3411 = vmatprep.mubr.bf16.mxu0 %v562
  %3412 = vmatmul.mubr.bf16.gmra.mxu0 %v561
  %v3413 = vpop.f32.mrf.mxu0
  %v3414 = vadd.f32 %v3373, %v3413
  %v3415 = vpop.f32.mrf.mxu0
  %v3416 = vadd.f32 %v3375, %v3415
  %v3417 = vpop.f32.mrf.mxu0
  %v3418 = vpop.f32.mrf.mxu0
  %3419 = vdwg.mxu0
  %3420 = vmatprep.subr.bf16.mxu0 %v2552
  %3421 = vmatpush1.bf16.msra.mxu0 %v2551
  %3422 = vmatprep.subr.bf16.mxu0 %v2544
  %3423 = vmatpush1.bf16.msra.mxu0 %v2543
  %3424 = vmatprep.subr.bf16.mxu0 %v2536
  %3425 = vmatpush1.bf16.msra.mxu0 %v2535
  %3426 = vmatprep.subr.bf16.mxu0 %v2528
  %3427 = vmatpush1.bf16.msra.mxu0 %v2527
  %3428 = vmatprep.subr.bf16.mxu0 %v2520
  %3429 = vmatpush1.bf16.msra.mxu0 %v2519
  %3430 = vmatprep.subr.bf16.mxu0 %v2512
  %3431 = vmatpush1.bf16.msra.mxu0 %v2511
  %3432 = vmatprep.subr.bf16.mxu0 %v2504
  %3433 = vmatpush1.bf16.msra.mxu0 %v2503
  %3434 = vmatprep.subr.bf16.mxu0 %v2496
  %3435 = vmatpush1.bf16.msra.mxu0 %v2495
  %3436 = vmatprep.subr.bf16.mxu0 %v2616
  %3437 = vmatpush2.bf16.msra.mxu0 %v2615
  %3438 = vmatprep.subr.bf16.mxu0 %v2608
  %3439 = vmatpush2.bf16.msra.mxu0 %v2607
  %3440 = vmatprep.subr.bf16.mxu0 %v2600
  %3441 = vmatpush2.bf16.msra.mxu0 %v2599
  %3442 = vmatprep.subr.bf16.mxu0 %v2592
  %3443 = vmatpush2.bf16.msra.mxu0 %v2591
  %3444 = vmatprep.subr.bf16.mxu0 %v2584
  %3445 = vmatpush2.bf16.msra.mxu0 %v2583
  %3446 = vmatprep.subr.bf16.mxu0 %v2576
  %3447 = vmatpush2.bf16.msra.mxu0 %v2575
  %3448 = vmatprep.subr.bf16.mxu0 %v2568
  %3449 = vmatpush2.bf16.msra.mxu0 %v2567
  %3450 = vmatprep.subr.bf16.mxu0 %v2560
  %3451 = vmatpush2.bf16.msra.mxu0 %v2559
  %3452 = vmatprep.mubr.bf16.mxu0 %v564
  %3453 = vmatmul.mubr.bf16.gmra.mxu0 %v563
  %v3454 = vpop.f32.mrf.mxu0
  %v3455 = vadd.f32 %v3414, %v3454
  %v3456 = vpop.f32.mrf.mxu0
  %v3457 = vadd.f32 %v3416, %v3456
  %v3458 = vpop.f32.mrf.mxu0
  %v3459 = vpop.f32.mrf.mxu0
  %3460 = vdwg.mxu0
  %3461 = vmatprep.subr.bf16.mxu0 %v2170
  %3462 = vmatpush1.bf16.msra.mxu0 %v2169
  %3463 = vmatprep.subr.bf16.mxu0 %v2162
  %3464 = vmatpush1.bf16.msra.mxu0 %v2161
  %3465 = vmatprep.subr.bf16.mxu0 %v2154
  %3466 = vmatpush1.bf16.msra.mxu0 %v2153
  %3467 = vmatprep.subr.bf16.mxu0 %v2146
  %3468 = vmatpush1.bf16.msra.mxu0 %v2145
  %3469 = vmatprep.subr.bf16.mxu0 %v2138
  %3470 = vmatpush1.bf16.msra.mxu0 %v2137
  %3471 = vmatprep.subr.bf16.mxu0 %v2130
  %3472 = vmatpush1.bf16.msra.mxu0 %v2129
  %3473 = vmatprep.subr.bf16.mxu0 %v2122
  %3474 = vmatpush1.bf16.msra.mxu0 %v2121
  %3475 = vmatprep.subr.bf16.mxu0 %v2114
  %3476 = vmatpush1.bf16.msra.mxu0 %v2113
  %3477 = vmatprep.subr.bf16.mxu0 %v2234
  %3478 = vmatpush2.bf16.msra.mxu0 %v2233
  %3479 = vmatprep.subr.bf16.mxu0 %v2226
  %3480 = vmatpush2.bf16.msra.mxu0 %v2225
  %3481 = vmatprep.subr.bf16.mxu0 %v2218
  %3482 = vmatpush2.bf16.msra.mxu0 %v2217
  %3483 = vmatprep.subr.bf16.mxu0 %v2210
  %3484 = vmatpush2.bf16.msra.mxu0 %v2209
  %3485 = vmatprep.subr.bf16.mxu0 %v2202
  %3486 = vmatpush2.bf16.msra.mxu0 %v2201
  %3487 = vmatprep.subr.bf16.mxu0 %v2194
  %3488 = vmatpush2.bf16.msra.mxu0 %v2193
  %3489 = vmatprep.subr.bf16.mxu0 %v2186
  %3490 = vmatpush2.bf16.msra.mxu0 %v2185
  %3491 = vmatprep.subr.bf16.mxu0 %v2178
  %3492 = vmatpush2.bf16.msra.mxu0 %v2177
  %3493 = vmatprep.mubr.bf16.mxu0 %v558
  %3494 = vmatmul.mubr.bf16.gmra.mxu0 %v557
  %v3495 = vpop.f32.mrf.mxu0
  %v3496 = vadd.f32 %v543, %v3495
  %v3497 = vpop.f32.mrf.mxu0
  %v3498 = vadd.f32 %v543, %v3497
  %v3499 = vpop.f32.mrf.mxu0
  %v3500 = vpop.f32.mrf.mxu0
  %3501 = vdwg.mxu0
  %3502 = vmatprep.subr.bf16.mxu0 %v2298
  %3503 = vmatpush1.bf16.msra.mxu0 %v2297
  %3504 = vmatprep.subr.bf16.mxu0 %v2290
  %3505 = vmatpush1.bf16.msra.mxu0 %v2289
  %3506 = vmatprep.subr.bf16.mxu0 %v2282
  %3507 = vmatpush1.bf16.msra.mxu0 %v2281
  %3508 = vmatprep.subr.bf16.mxu0 %v2274
  %3509 = vmatpush1.bf16.msra.mxu0 %v2273
  %3510 = vmatprep.subr.bf16.mxu0 %v2266
  %3511 = vmatpush1.bf16.msra.mxu0 %v2265
  %3512 = vmatprep.subr.bf16.mxu0 %v2258
  %3513 = vmatpush1.bf16.msra.mxu0 %v2257
  %3514 = vmatprep.subr.bf16.mxu0 %v2250
  %3515 = vmatpush1.bf16.msra.mxu0 %v2249
  %3516 = vmatprep.subr.bf16.mxu0 %v2242
  %3517 = vmatpush1.bf16.msra.mxu0 %v2241
  %3518 = vmatprep.subr.bf16.mxu0 %v2362
  %3519 = vmatpush2.bf16.msra.mxu0 %v2361
  %3520 = vmatprep.subr.bf16.mxu0 %v2354
  %3521 = vmatpush2.bf16.msra.mxu0 %v2353
  %3522 = vmatprep.subr.bf16.mxu0 %v2346
  %3523 = vmatpush2.bf16.msra.mxu0 %v2345
  %3524 = vmatprep.subr.bf16.mxu0 %v2338
  %3525 = vmatpush2.bf16.msra.mxu0 %v2337
  %3526 = vmatprep.subr.bf16.mxu0 %v2330
  %3527 = vmatpush2.bf16.msra.mxu0 %v2329
  %3528 = vmatprep.subr.bf16.mxu0 %v2322
  %3529 = vmatpush2.bf16.msra.mxu0 %v2321
  %3530 = vmatprep.subr.bf16.mxu0 %v2314
  %3531 = vmatpush2.bf16.msra.mxu0 %v2313
  %3532 = vmatprep.subr.bf16.mxu0 %v2306
  %3533 = vmatpush2.bf16.msra.mxu0 %v2305
  %3534 = vmatprep.mubr.bf16.mxu0 %v560
  %3535 = vmatmul.mubr.bf16.gmra.mxu0 %v559
  %v3536 = vpop.f32.mrf.mxu0
  %v3537 = vadd.f32 %v3496, %v3536
  %v3538 = vpop.f32.mrf.mxu0
  %v3539 = vadd.f32 %v3498, %v3538
  %v3540 = vpop.f32.mrf.mxu0
  %v3541 = vpop.f32.mrf.mxu0
  %3542 = vdwg.mxu0
  %3543 = vmatprep.subr.bf16.mxu0 %v2426
  %3544 = vmatpush1.bf16.msra.mxu0 %v2425
  %3545 = vmatprep.subr.bf16.mxu0 %v2418
  %3546 = vmatpush1.bf16.msra.mxu0 %v2417
  %3547 = vmatprep.subr.bf16.mxu0 %v2410
  %3548 = vmatpush1.bf16.msra.mxu0 %v2409
  %3549 = vmatprep.subr.bf16.mxu0 %v2402
  %3550 = vmatpush1.bf16.msra.mxu0 %v2401
  %3551 = vmatprep.subr.bf16.mxu0 %v2394
  %3552 = vmatpush1.bf16.msra.mxu0 %v2393
  %3553 = vmatprep.subr.bf16.mxu0 %v2386
  %3554 = vmatpush1.bf16.msra.mxu0 %v2385
  %3555 = vmatprep.subr.bf16.mxu0 %v2378
  %3556 = vmatpush1.bf16.msra.mxu0 %v2377
  %3557 = vmatprep.subr.bf16.mxu0 %v2370
  %3558 = vmatpush1.bf16.msra.mxu0 %v2369
  %3559 = vmatprep.subr.bf16.mxu0 %v2490
  %3560 = vmatpush2.bf16.msra.mxu0 %v2489
  %3561 = vmatprep.subr.bf16.mxu0 %v2482
  %3562 = vmatpush2.bf16.msra.mxu0 %v2481
  %3563 = vmatprep.subr.bf16.mxu0 %v2474
  %3564 = vmatpush2.bf16.msra.mxu0 %v2473
  %3565 = vmatprep.subr.bf16.mxu0 %v2466
  %3566 = vmatpush2.bf16.msra.mxu0 %v2465
  %3567 = vmatprep.subr.bf16.mxu0 %v2458
  %3568 = vmatpush2.bf16.msra.mxu0 %v2457
  %3569 = vmatprep.subr.bf16.mxu0 %v2450
  %3570 = vmatpush2.bf16.msra.mxu0 %v2449
  %3571 = vmatprep.subr.bf16.mxu0 %v2442
  %3572 = vmatpush2.bf16.msra.mxu0 %v2441
  %3573 = vmatprep.subr.bf16.mxu0 %v2434
  %3574 = vmatpush2.bf16.msra.mxu0 %v2433
  %3575 = vmatprep.mubr.bf16.mxu0 %v562
  %3576 = vmatmul.mubr.bf16.gmra.mxu0 %v561
  %v3577 = vpop.f32.mrf.mxu0
  %v3578 = vadd.f32 %v3537, %v3577
  %v3579 = vpop.f32.mrf.mxu0
  %v3580 = vadd.f32 %v3539, %v3579
  %v3581 = vpop.f32.mrf.mxu0
  %v3582 = vpop.f32.mrf.mxu0
  %3583 = vdwg.mxu0
  %3584 = vmatprep.subr.bf16.mxu0 %v2554
  %3585 = vmatpush1.bf16.msra.mxu0 %v2553
  %3586 = vmatprep.subr.bf16.mxu0 %v2546
  %3587 = vmatpush1.bf16.msra.mxu0 %v2545
  %3588 = vmatprep.subr.bf16.mxu0 %v2538
  %3589 = vmatpush1.bf16.msra.mxu0 %v2537
  %3590 = vmatprep.subr.bf16.mxu0 %v2530
  %3591 = vmatpush1.bf16.msra.mxu0 %v2529
  %3592 = vmatprep.subr.bf16.mxu0 %v2522
  %3593 = vmatpush1.bf16.msra.mxu0 %v2521
  %3594 = vmatprep.subr.bf16.mxu0 %v2514
  %3595 = vmatpush1.bf16.msra.mxu0 %v2513
  %3596 = vmatprep.subr.bf16.mxu0 %v2506
  %3597 = vmatpush1.bf16.msra.mxu0 %v2505
  %3598 = vmatprep.subr.bf16.mxu0 %v2498
  %3599 = vmatpush1.bf16.msra.mxu0 %v2497
  %3600 = vmatprep.subr.bf16.mxu0 %v2618
  %3601 = vmatpush2.bf16.msra.mxu0 %v2617
  %3602 = vmatprep.subr.bf16.mxu0 %v2610
  %3603 = vmatpush2.bf16.msra.mxu0 %v2609
  %3604 = vmatprep.subr.bf16.mxu0 %v2602
  %3605 = vmatpush2.bf16.msra.mxu0 %v2601
  %3606 = vmatprep.subr.bf16.mxu0 %v2594
  %3607 = vmatpush2.bf16.msra.mxu0 %v2593
  %3608 = vmatprep.subr.bf16.mxu0 %v2586
  %3609 = vmatpush2.bf16.msra.mxu0 %v2585
  %3610 = vmatprep.subr.bf16.mxu0 %v2578
  %3611 = vmatpush2.bf16.msra.mxu0 %v2577
  %3612 = vmatprep.subr.bf16.mxu0 %v2570
  %3613 = vmatpush2.bf16.msra.mxu0 %v2569
  %3614 = vmatprep.subr.bf16.mxu0 %v2562
  %3615 = vmatpush2.bf16.msra.mxu0 %v2561
  %3616 = vmatprep.mubr.bf16.mxu0 %v564
  %3617 = vmatmul.mubr.bf16.gmra.mxu0 %v563
  %v3618 = vpop.f32.mrf.mxu0
  %v3619 = vadd.f32 %v3578, %v3618
  %v3620 = vpop.f32.mrf.mxu0
  %v3621 = vadd.f32 %v3580, %v3620
  %v3622 = vpop.f32.mrf.mxu0
  %v3623 = vpop.f32.mrf.mxu0
  %3624 = vdwg.mxu0
  %3625 = vmatprep.subr.bf16.mxu0 %v2172
  %3626 = vmatpush1.bf16.msra.mxu0 %v2171
  %3627 = vmatprep.subr.bf16.mxu0 %v2164
  %3628 = vmatpush1.bf16.msra.mxu0 %v2163
  %3629 = vmatprep.subr.bf16.mxu0 %v2156
  %3630 = vmatpush1.bf16.msra.mxu0 %v2155
  %3631 = vmatprep.subr.bf16.mxu0 %v2148
  %3632 = vmatpush1.bf16.msra.mxu0 %v2147
  %3633 = vmatprep.subr.bf16.mxu0 %v2140
  %3634 = vmatpush1.bf16.msra.mxu0 %v2139
  %3635 = vmatprep.subr.bf16.mxu0 %v2132
  %3636 = vmatpush1.bf16.msra.mxu0 %v2131
  %3637 = vmatprep.subr.bf16.mxu0 %v2124
  %3638 = vmatpush1.bf16.msra.mxu0 %v2123
  %3639 = vmatprep.subr.bf16.mxu0 %v2116
  %3640 = vmatpush1.bf16.msra.mxu0 %v2115
  %3641 = vmatprep.subr.bf16.mxu0 %v2236
  %3642 = vmatpush2.bf16.msra.mxu0 %v2235
  %3643 = vmatprep.subr.bf16.mxu0 %v2228
  %3644 = vmatpush2.bf16.msra.mxu0 %v2227
  %3645 = vmatprep.subr.bf16.mxu0 %v2220
  %3646 = vmatpush2.bf16.msra.mxu0 %v2219
  %3647 = vmatprep.subr.bf16.mxu0 %v2212
  %3648 = vmatpush2.bf16.msra.mxu0 %v2211
  %3649 = vmatprep.subr.bf16.mxu0 %v2204
  %3650 = vmatpush2.bf16.msra.mxu0 %v2203
  %3651 = vmatprep.subr.bf16.mxu0 %v2196
  %3652 = vmatpush2.bf16.msra.mxu0 %v2195
  %3653 = vmatprep.subr.bf16.mxu0 %v2188
  %3654 = vmatpush2.bf16.msra.mxu0 %v2187
  %3655 = vmatprep.subr.bf16.mxu0 %v2180
  %3656 = vmatpush2.bf16.msra.mxu0 %v2179
  %3657 = vmatprep.mubr.bf16.mxu0 %v558
  %3658 = vmatmul.mubr.bf16.gmra.mxu0 %v557
  %v3659 = vpop.f32.mrf.mxu0
  %v3660 = vadd.f32 %v543, %v3659
  %v3661 = vpop.f32.mrf.mxu0
  %v3662 = vadd.f32 %v543, %v3661
  %v3663 = vpop.f32.mrf.mxu0
  %v3664 = vpop.f32.mrf.mxu0
  %3665 = vdwg.mxu0
  %3666 = vmatprep.subr.bf16.mxu0 %v2300
  %3667 = vmatpush1.bf16.msra.mxu0 %v2299
  %3668 = vmatprep.subr.bf16.mxu0 %v2292
  %3669 = vmatpush1.bf16.msra.mxu0 %v2291
  %3670 = vmatprep.subr.bf16.mxu0 %v2284
  %3671 = vmatpush1.bf16.msra.mxu0 %v2283
  %3672 = vmatprep.subr.bf16.mxu0 %v2276
  %3673 = vmatpush1.bf16.msra.mxu0 %v2275
  %3674 = vmatprep.subr.bf16.mxu0 %v2268
  %3675 = vmatpush1.bf16.msra.mxu0 %v2267
  %3676 = vmatprep.subr.bf16.mxu0 %v2260
  %3677 = vmatpush1.bf16.msra.mxu0 %v2259
  %3678 = vmatprep.subr.bf16.mxu0 %v2252
  %3679 = vmatpush1.bf16.msra.mxu0 %v2251
  %3680 = vmatprep.subr.bf16.mxu0 %v2244
  %3681 = vmatpush1.bf16.msra.mxu0 %v2243
  %3682 = vmatprep.subr.bf16.mxu0 %v2364
  %3683 = vmatpush2.bf16.msra.mxu0 %v2363
  %3684 = vmatprep.subr.bf16.mxu0 %v2356
  %3685 = vmatpush2.bf16.msra.mxu0 %v2355
  %3686 = vmatprep.subr.bf16.mxu0 %v2348
  %3687 = vmatpush2.bf16.msra.mxu0 %v2347
  %3688 = vmatprep.subr.bf16.mxu0 %v2340
  %3689 = vmatpush2.bf16.msra.mxu0 %v2339
  %3690 = vmatprep.subr.bf16.mxu0 %v2332
  %3691 = vmatpush2.bf16.msra.mxu0 %v2331
  %3692 = vmatprep.subr.bf16.mxu0 %v2324
  %3693 = vmatpush2.bf16.msra.mxu0 %v2323
  %3694 = vmatprep.subr.bf16.mxu0 %v2316
  %3695 = vmatpush2.bf16.msra.mxu0 %v2315
  %3696 = vmatprep.subr.bf16.mxu0 %v2308
  %3697 = vmatpush2.bf16.msra.mxu0 %v2307
  %3698 = vmatprep.mubr.bf16.mxu0 %v560
  %3699 = vmatmul.mubr.bf16.gmra.mxu0 %v559
  %v3700 = vpop.f32.mrf.mxu0
  %v3701 = vadd.f32 %v3660, %v3700
  %v3702 = vpop.f32.mrf.mxu0
  %v3703 = vadd.f32 %v3662, %v3702
  %v3704 = vpop.f32.mrf.mxu0
  %v3705 = vpop.f32.mrf.mxu0
  %3706 = vdwg.mxu0
  %3707 = vmatprep.subr.bf16.mxu0 %v2428
  %3708 = vmatpush1.bf16.msra.mxu0 %v2427
  %3709 = vmatprep.subr.bf16.mxu0 %v2420
  %3710 = vmatpush1.bf16.msra.mxu0 %v2419
  %3711 = vmatprep.subr.bf16.mxu0 %v2412
  %3712 = vmatpush1.bf16.msra.mxu0 %v2411
  %3713 = vmatprep.subr.bf16.mxu0 %v2404
  %3714 = vmatpush1.bf16.msra.mxu0 %v2403
  %3715 = vmatprep.subr.bf16.mxu0 %v2396
  %3716 = vmatpush1.bf16.msra.mxu0 %v2395
  %3717 = vmatprep.subr.bf16.mxu0 %v2388
  %3718 = vmatpush1.bf16.msra.mxu0 %v2387
  %3719 = vmatprep.subr.bf16.mxu0 %v2380
  %3720 = vmatpush1.bf16.msra.mxu0 %v2379
  %3721 = vmatprep.subr.bf16.mxu0 %v2372
  %3722 = vmatpush1.bf16.msra.mxu0 %v2371
  %3723 = vmatprep.subr.bf16.mxu0 %v2492
  %3724 = vmatpush2.bf16.msra.mxu0 %v2491
  %3725 = vmatprep.subr.bf16.mxu0 %v2484
  %3726 = vmatpush2.bf16.msra.mxu0 %v2483
  %3727 = vmatprep.subr.bf16.mxu0 %v2476
  %3728 = vmatpush2.bf16.msra.mxu0 %v2475
  %3729 = vmatprep.subr.bf16.mxu0 %v2468
  %3730 = vmatpush2.bf16.msra.mxu0 %v2467
  %3731 = vmatprep.subr.bf16.mxu0 %v2460
  %3732 = vmatpush2.bf16.msra.mxu0 %v2459
  %3733 = vmatprep.subr.bf16.mxu0 %v2452
  %3734 = vmatpush2.bf16.msra.mxu0 %v2451
  %3735 = vmatprep.subr.bf16.mxu0 %v2444
  %3736 = vmatpush2.bf16.msra.mxu0 %v2443
  %3737 = vmatprep.subr.bf16.mxu0 %v2436
  %3738 = vmatpush2.bf16.msra.mxu0 %v2435
  %3739 = vmatprep.mubr.bf16.mxu0 %v562
  %3740 = vmatmul.mubr.bf16.gmra.mxu0 %v561
  %v3741 = vpop.f32.mrf.mxu0
  %v3742 = vadd.f32 %v3701, %v3741
  %v3743 = vpop.f32.mrf.mxu0
  %v3744 = vadd.f32 %v3703, %v3743
  %v3745 = vpop.f32.mrf.mxu0
  %v3746 = vpop.f32.mrf.mxu0
  %3747 = vdwg.mxu0
  %3748 = vmatprep.subr.bf16.mxu0 %v2556
  %3749 = vmatpush1.bf16.msra.mxu0 %v2555
  %3750 = vmatprep.subr.bf16.mxu0 %v2548
  %3751 = vmatpush1.bf16.msra.mxu0 %v2547
  %3752 = vmatprep.subr.bf16.mxu0 %v2540
  %3753 = vmatpush1.bf16.msra.mxu0 %v2539
  %3754 = vmatprep.subr.bf16.mxu0 %v2532
  %3755 = vmatpush1.bf16.msra.mxu0 %v2531
  %3756 = vmatprep.subr.bf16.mxu0 %v2524
  %3757 = vmatpush1.bf16.msra.mxu0 %v2523
  %3758 = vmatprep.subr.bf16.mxu0 %v2516
  %3759 = vmatpush1.bf16.msra.mxu0 %v2515
  %3760 = vmatprep.subr.bf16.mxu0 %v2508
  %3761 = vmatpush1.bf16.msra.mxu0 %v2507
  %3762 = vmatprep.subr.bf16.mxu0 %v2500
  %3763 = vmatpush1.bf16.msra.mxu0 %v2499
  %3764 = vmatprep.subr.bf16.mxu0 %v2620
  %3765 = vmatpush2.bf16.msra.mxu0 %v2619
  %3766 = vmatprep.subr.bf16.mxu0 %v2612
  %3767 = vmatpush2.bf16.msra.mxu0 %v2611
  %3768 = vmatprep.subr.bf16.mxu0 %v2604
  %3769 = vmatpush2.bf16.msra.mxu0 %v2603
  %3770 = vmatprep.subr.bf16.mxu0 %v2596
  %3771 = vmatpush2.bf16.msra.mxu0 %v2595
  %3772 = vmatprep.subr.bf16.mxu0 %v2588
  %3773 = vmatpush2.bf16.msra.mxu0 %v2587
  %3774 = vmatprep.subr.bf16.mxu0 %v2580
  %3775 = vmatpush2.bf16.msra.mxu0 %v2579
  %3776 = vmatprep.subr.bf16.mxu0 %v2572
  %3777 = vmatpush2.bf16.msra.mxu0 %v2571
  %3778 = vmatprep.subr.bf16.mxu0 %v2564
  %3779 = vmatpush2.bf16.msra.mxu0 %v2563
  %3780 = vmatprep.mubr.bf16.mxu0 %v564
  %3781 = vmatmul.mubr.bf16.gmra.mxu0 %v563
  %v3782 = vpop.f32.mrf.mxu0
  %v3783 = vadd.f32 %v3742, %v3782
  %v3784 = vpop.f32.mrf.mxu0
  %v3785 = vadd.f32 %v3744, %v3784
  %v3786 = vpop.f32.mrf.mxu0
  %v3787 = vpop.f32.mrf.mxu0
  %3788 = vdwg.mxu0
  %v3789 = vadd.f32 %v3291, %v3293
  %v3790 = vadd.f32 %v3789, %v3455
  %v3791 = vadd.f32 %v3790, %v3457
  %v3792 = vadd.f32 %v3791, %v3619
  %v3793 = vadd.f32 %v3792, %v3621
  %v3794 = vadd.f32 %v3793, %v3783
  %v3795 = vadd.f32 %v3794, %v3785
  %3796 = vadd.xlane.f32.xlu0 %v3795
  %v3797 = vpop.xlane.xlu0 %3796
  %v3798 = vmul.f32 %v3291, %v3291
  %v3799 = vmul.f32 %v3293, %v3293
  %v3800 = vmul.f32 %v3455, %v3455
  %v3801 = vmul.f32 %v3457, %v3457
  %v3802 = vmul.f32 %v3619, %v3619
  %v3803 = vmul.f32 %v3621, %v3621
  %v3804 = vmul.f32 %v3783, %v3783
  %v3805 = vmul.f32 %v3785, %v3785
  %v3806 = vadd.f32 %v3798, %v3799
  %v3807 = vadd.f32 %v3806, %v3800
  %v3808 = vadd.f32 %v3807, %v3801
  %v3809 = vadd.f32 %v3808, %v3802
  %v3810 = vadd.f32 %v3809, %v3803
  %v3811 = vadd.f32 %v3810, %v3804
  %v3812 = vadd.f32 %v3811, %v3805
  %3813 = vadd.xlane.f32.xlu0 %v3812
  %v3814 = vpop.xlane.xlu0 %3813
  %v3815 = vmul.f32 %v3797, 0.0009765625
  %v3816 = vmul.f32 %v3814, 0.0009765625
  %v3817 = vmul.f32 %v3815, %v3815
  %v3818 = vsub.f32 %v3816, %v3817
  %v3819 = vadd.f32 %v3818, 1e-05
  %v3820 = vrsqrt.pop %v3819
  %v3821 = vld [vmem:[%s3] sm:$0xff]
  %v3822 = vmul.f32 %v3820, %v3821
  %v3823 = vld [vmem:[%s4] sm:$0xff]
  %v3824 = vmul.f32 %v3815, %v3822
  %v3825 = vsub.f32 %v3823, %v3824
  %3827 = vset.pattern.permute.xlu0 0
  %3828 = vperm.xlu0 %3827, %v3822
  %v3829 = vpop.permute.xlu0 %3828
  %v3831 = vmul.f32 %v3291, %v3829
  %v3832 = vmul.f32 %v3293, %v3829
  %v3833 = vmul.f32 %v3455, %v3829
  %v3834 = vmul.f32 %v3457, %v3829
  %v3835 = vmul.f32 %v3619, %v3829
  %v3836 = vmul.f32 %v3621, %v3829
  %v3837 = vmul.f32 %v3783, %v3829
  %v3838 = vmul.f32 %v3785, %v3829
  %3840 = vset.pattern.permute.xlu0 0
  %3841 = vperm.xlu0 %3840, %v3825
  %v3842 = vpop.permute.xlu0 %3841
  %v3844 = vadd.f32 %v3831, %v3842
  %v3845 = vadd.f32 %v3832, %v3842
  %v3846 = vadd.f32 %v3833, %v3842
  %v3847 = vadd.f32 %v3834, %v3842
  %v3848 = vadd.f32 %v3835, %v3842
  %v3849 = vadd.f32 %v3836, %v3842
  %v3850 = vadd.f32 %v3837, %v3842
  %v3851 = vadd.f32 %v3838, %v3842
  %v3852 = vmax.f32 %v3844, 0.0
  %v3853 = vmax.f32 %v3845, 0.0
  %v3854 = vmax.f32 %v3846, 0.0
  %v3855 = vmax.f32 %v3847, 0.0
  %v3856 = vmax.f32 %v3848, 0.0
  %v3857 = vmax.f32 %v3849, 0.0
  %v3858 = vmax.f32 %v3850, 0.0
  %v3859 = vmax.f32 %v3851, 0.0
  %3860 = vst [vmem:[%s6] sm:$0xff] %v3852
  %3861 = vst [vmem:[%s6 + $0x8] sm:$0xff] %v3853
  %3862 = vst [vmem:[%s6 + $0x10] sm:$0xff] %v3854
  %3863 = vst [vmem:[%s6 + $0x18] sm:$0xff] %v3855
  %3864 = vst [vmem:[%s6 + $0x20] sm:$0xff] %v3856
  %3865 = vst [vmem:[%s6 + $0x28] sm:$0xff] %v3857
  %3866 = vst [vmem:[%s6 + $0x30] sm:$0xff] %v3858
  %3867 = vst [vmem:[%s6 + $0x38] sm:$0xff] %v3859
  // Predicated region
  $region26: #{luconv_pallas.1} parent=0 // pred_check
    _
  $region27: #{luconv_pallas.1} parent=0 // pred_check_branch
    %3869 = sbr.rel (0) target = $region29
  $region28: #{luconv_pallas.1} parent=0 // pred_region
    _
  $region29: #{luconv_pallas.1} parent=0 // pred_fallthru
    _
  // Predicated region
  $region30: #{luconv_pallas.1} parent=0 // pred_check
    _
  $region31: #{luconv_pallas.1} parent=0 // pred_check_branch
    %3871 = sbr.rel (0) target = $region33
  $region32: #{luconv_pallas.1} parent=0 // pred_region
    _
  $region33: #{luconv_pallas.1} parent=0 // pred_fallthru
    _

</llo_original>
